<compile_context>
chip_gen: v7x
topology: tpu7x:2x2x1
jax: 0.10.0
libtpu: 0.0.40
codegen_flags: <defaults>
</compile_context>

<pallas_src>
import functools

import jax
import jax.numpy as jnp
from jax.experimental import pallas as pl
from jax.experimental.pallas import tpu as pltpu

B = 2       # batch
C = 4       # channels
H = W = 16  # spatial
S = 8       # number of query points


def _grid_sample_kernel(uv_ref, img_ref, o_ref, *, ih, iw):
    """Bilinear grid_sample at S query points; output already in (S, B, C).

    uv_ref  : (2, S, B)     [0] = normalized x coord, [1] = normalized y coord
    img_ref : (B, C, H, W)  feature map (original layout, untouched on host)
    o_ref   : (S, B, C)     sampled features, final output order
    """
    # ---- query coords (first-axis ref indexing is free) --------------------
    ix = uv_ref[0].astype(jnp.float32)            # (S, B)
    iy = uv_ref[1].astype(jnp.float32)

    # align_corners=True mapping from [-1, 1] to pixel coordinates
    ix = (ix + 1.0) * 0.5 * (iw - 1)
    iy = (iy + 1.0) * 0.5 * (ih - 1)

    ix0 = jnp.floor(ix)
    iy0 = jnp.floor(iy)

    # Bilinear weights from the UNclamped corners (matches the reference
    # grid_sample, which clamps only after computing the weights).  The four
    # corner weights factor exactly: nw=wy0*wx0, ne=wy0*wx1, sw=wy1*wx0,
    # se=wy1*wx1.
    wx1 = ix - ix0
    wx0 = ix0 + 1.0 - ix
    wy1 = iy - iy0
    wy0 = iy0 + 1.0 - iy

    # Border-clamped corner indices for the gather.
    cx0 = jnp.clip(ix0, 0.0, iw - 1).astype(jnp.int32)
    cx1 = jnp.clip(ix0 + 1.0, 0.0, iw - 1).astype(jnp.int32)
    cy0 = jnp.clip(iy0, 0.0, ih - 1).astype(jnp.int32)
    cy1 = jnp.clip(iy0 + 1.0, 0.0, ih - 1).astype(jnp.int32)

    # ---- separable weighted one-hots: (S, B, W) columns, (S, B, H) rows ----
    # (Clamped-index collisions at the border simply add their weights, which
    #  is exactly what summing the separate gathers does.)
    s, b = ix.shape
    x_iota = jax.lax.broadcasted_iota(jnp.int32, (s, b, iw), 2)
    y_iota = jax.lax.broadcasted_iota(jnp.int32, (s, b, ih), 2)

    col_w = (jnp.where(x_iota == cx0[:, :, None], wx0[:, :, None], 0.0) +
             jnp.where(x_iota == cx1[:, :, None], wx1[:, :, None], 0.0))
    row_w = (jnp.where(y_iota == cy0[:, :, None], wy0[:, :, None], 0.0) +
             jnp.where(y_iota == cy1[:, :, None], wy1[:, :, None], 0.0))

    # ---- two-stage VPU blend (no MXU, no batched trans-B einsum) -----------
    img = img_ref[...].astype(jnp.float32)        # (B, C, H, W)
    nc = img.shape[1]
    outs = []
    for c in range(nc):                           # unrolled at trace time, C=4
        imgc = img[:, c]                          # (B, H, W)
        # contract W (lane axis):  tmp[s,b,y] = sum_x col_w[s,b,x]*img[b,c,y,x]
        tmp = jnp.sum(col_w[:, :, None, :] * imgc[None, :, :, :], axis=-1)
        # contract H:              out[s,b]   = sum_y row_w[s,b,y]*tmp[s,b,y]
        outs.append(jnp.sum(row_w * tmp, axis=-1))          # (S, B)
    o_ref[...] = jnp.stack(outs, axis=-1).astype(o_ref.dtype)   # (S, B, C)


def pallas_query_uv_extract(x, uv):
    """query_uv_extractor.forward: (B,C,H,W), (B,S,2) -> img_feature (S,B,C)."""
    bsz, ch, ih, iw = x.shape
    s = uv.shape[1]

    # Only host-side op: put uv in (2, S, B) order so the kernel slices it with
    # free first-axis indexing and produces (S, B, C) directly (no wrapper
    # transpose of the output, no host slices/casts).
    uv_t = jnp.transpose(uv, (2, 1, 0))           # (2, S, B)

    return pl.pallas_call(
        functools.partial(_grid_sample_kernel, ih=ih, iw=iw),
        out_shape=jax.ShapeDtypeStruct((s, bsz, ch), jnp.float32),
        in_specs=[
            pl.BlockSpec(memory_space=pltpu.MemorySpace.VMEM),
            pl.BlockSpec(memory_space=pltpu.MemorySpace.VMEM),
        ],
        out_specs=pl.BlockSpec(memory_space=pltpu.MemorySpace.VMEM),
    )(uv_t, x)


def image_feature_extractor_forward(x, uv):
    """Image_feature_extractor_model('query_uv_feature', ...).forward."""
    feature = pallas_query_uv_extract(x, uv)
    output_dict = {"img_feature": feature}
    debug_info = {}
    return output_dict, debug_info


# ---------------------------- pure-JAX reference ------------------------------
def _reference_forward(x, uv):
    bsz, ch, ih, iw = x.shape
    ix = (uv[..., 0] + 1.0) * 0.5 * (iw - 1)
    iy = (uv[..., 1] + 1.0) * 0.5 * (ih - 1)
    ix_nw = jnp.floor(ix)
    iy_nw = jnp.floor(iy)
    nw = (ix_nw + 1.0 - ix) * (iy_nw + 1.0 - iy)
    ne = (ix - ix_nw) * (iy_nw + 1.0 - iy)
    sw = (ix_nw + 1.0 - ix) * (iy - iy_nw)
    se = (ix - ix_nw) * (iy - iy_nw)
    cx0 = jnp.clip(ix_nw, 0, iw - 1).astype(jnp.int32)
    cx1 = jnp.clip(ix_nw + 1.0, 0, iw - 1).astype(jnp.int32)
    cy0 = jnp.clip(iy_nw, 0, ih - 1).astype(jnp.int32)
    cy1 = jnp.clip(iy_nw + 1.0, 0, ih - 1).astype(jnp.int32)
    img = x.reshape(bsz, ch, ih * iw)

    def gather(idx):
        idxb = jnp.broadcast_to(idx[:, None, :], (bsz, ch, idx.shape[-1]))
        return jnp.take_along_axis(img, idxb, axis=2)

    out = (gather(cy0 * iw + cx0) * nw[:, None, :] +
           gather(cy0 * iw + cx1) * ne[:, None, :] +
           gather(cy1 * iw + cx0) * sw[:, None, :] +
           gather(cy1 * iw + cx1) * se[:, None, :])        # (B, C, S)
    return jnp.transpose(out, (2, 0, 1))                    # (S, B, C)


if __name__ == "__main__":
    key = jax.random.PRNGKey(0)
    kx, kuv = jax.random.split(key)
    x = jax.random.normal(kx, (B, C, H, W), jnp.float32)
    uv = jax.random.uniform(kuv, (B, S, 2), jnp.float32, minval=-1.0, maxval=1.0)

    fwd = jax.jit(image_feature_extractor_forward)
    out_dict, debug_info = fwd(x, uv)
    feat = jax.block_until_ready(out_dict["img_feature"])

    assert feat.shape == (S, B, C), feat.shape
    assert feat.dtype == jnp.float32
    ref = _reference_forward(x, uv)
    max_err = float(jnp.max(jnp.abs(feat - ref)))
    assert bool(jnp.allclose(feat, ref, atol=1e-4, rtol=1e-4)), max_err
    print("KERNEL_OK")
</pallas_src>

<mosaic_0001>
module attributes {stable_mosaic.version = 11 : i64} {
  func.func @_grid_sample_kernel(%arg0: memref<2x8x2xf32, #tpu.memory_space<vmem>>, %arg1: memref<2x4x16x16xf32, #tpu.memory_space<vmem>>, %arg2: memref<8x2x4xf32, #tpu.memory_space<vmem>>) attributes {dimension_semantics = [], scalar_prefetch = 0 : i64, scratch_operands = 0 : i64, tpu.core_type = #tpu.core_type<tc>} {
    %c0 = arith.constant 0 : index
    %c0_0 = arith.constant 0 : index
    %c0_1 = arith.constant 0 : index
    %0 = vector.load %arg0[%c0, %c0_0, %c0_1] : memref<2x8x2xf32, #tpu.memory_space<vmem>>, vector<1x8x2xf32>
    %1 = vector.shape_cast %0 : vector<1x8x2xf32> to vector<8x2xf32>
    %c1 = arith.constant 1 : index
    %c0_2 = arith.constant 0 : index
    %c0_3 = arith.constant 0 : index
    %2 = vector.load %arg0[%c1, %c0_2, %c0_3] : memref<2x8x2xf32, #tpu.memory_space<vmem>>, vector<1x8x2xf32>
    %3 = vector.shape_cast %2 : vector<1x8x2xf32> to vector<8x2xf32>
    %cst = arith.constant 1.000000e+00 : f32
    %4 = vector.broadcast %cst : f32 to vector<8x2xf32>
    %5 = arith.addf %1, %4 : vector<8x2xf32>
    %cst_4 = arith.constant 5.000000e-01 : f32
    %6 = vector.broadcast %cst_4 : f32 to vector<8x2xf32>
    %7 = arith.mulf %5, %6 : vector<8x2xf32>
    %cst_5 = arith.constant 1.500000e+01 : f32
    %8 = vector.broadcast %cst_5 : f32 to vector<8x2xf32>
    %9 = arith.mulf %7, %8 : vector<8x2xf32>
    %cst_6 = arith.constant 1.000000e+00 : f32
    %10 = vector.broadcast %cst_6 : f32 to vector<8x2xf32>
    %11 = arith.addf %3, %10 : vector<8x2xf32>
    %cst_7 = arith.constant 5.000000e-01 : f32
    %12 = vector.broadcast %cst_7 : f32 to vector<8x2xf32>
    %13 = arith.mulf %11, %12 : vector<8x2xf32>
    %cst_8 = arith.constant 1.500000e+01 : f32
    %14 = vector.broadcast %cst_8 : f32 to vector<8x2xf32>
    %15 = arith.mulf %13, %14 : vector<8x2xf32>
    %16 = math.floor %9 : vector<8x2xf32>
    %17 = math.floor %15 : vector<8x2xf32>
    %18 = arith.subf %9, %16 : vector<8x2xf32>
    %cst_9 = arith.constant 1.000000e+00 : f32
    %19 = vector.broadcast %cst_9 : f32 to vector<8x2xf32>
    %20 = arith.addf %16, %19 : vector<8x2xf32>
    %21 = arith.subf %20, %9 : vector<8x2xf32>
    %22 = arith.subf %15, %17 : vector<8x2xf32>
    %cst_10 = arith.constant 1.000000e+00 : f32
    %23 = vector.broadcast %cst_10 : f32 to vector<8x2xf32>
    %24 = arith.addf %17, %23 : vector<8x2xf32>
    %25 = arith.subf %24, %15 : vector<8x2xf32>
    %cst_11 = arith.constant 0.000000e+00 : f32
    %c15_i32 = arith.constant 15 : i32
    %26 = vector.broadcast %cst_11 : f32 to vector<8x2xf32>
    %27 = arith.maximumf %26, %16 : vector<8x2xf32>
    %28 = arith.sitofp %c15_i32 : i32 to f32
    %29 = vector.broadcast %28 : f32 to vector<8x2xf32>
    %30 = arith.minimumf %29, %27 : vector<8x2xf32>
    %31 = arith.fptosi %30 : vector<8x2xf32> to vector<8x2xi32>
    %cst_12 = arith.constant 1.000000e+00 : f32
    %32 = vector.broadcast %cst_12 : f32 to vector<8x2xf32>
    %33 = arith.addf %16, %32 : vector<8x2xf32>
    %cst_13 = arith.constant 0.000000e+00 : f32
    %c15_i32_14 = arith.constant 15 : i32
    %34 = vector.broadcast %cst_13 : f32 to vector<8x2xf32>
    %35 = arith.maximumf %34, %33 : vector<8x2xf32>
    %36 = arith.sitofp %c15_i32_14 : i32 to f32
    %37 = vector.broadcast %36 : f32 to vector<8x2xf32>
    %38 = arith.minimumf %37, %35 : vector<8x2xf32>
    %39 = arith.fptosi %38 : vector<8x2xf32> to vector<8x2xi32>
    %cst_15 = arith.constant 0.000000e+00 : f32
    %c15_i32_16 = arith.constant 15 : i32
    %40 = vector.broadcast %cst_15 : f32 to vector<8x2xf32>
    %41 = arith.maximumf %40, %17 : vector<8x2xf32>
    %42 = arith.sitofp %c15_i32_16 : i32 to f32
    %43 = vector.broadcast %42 : f32 to vector<8x2xf32>
    %44 = arith.minimumf %43, %41 : vector<8x2xf32>
    %45 = arith.fptosi %44 : vector<8x2xf32> to vector<8x2xi32>
    %cst_17 = arith.constant 1.000000e+00 : f32
    %46 = vector.broadcast %cst_17 : f32 to vector<8x2xf32>
    %47 = arith.addf %17, %46 : vector<8x2xf32>
    %cst_18 = arith.constant 0.000000e+00 : f32
    %c15_i32_19 = arith.constant 15 : i32
    %48 = vector.broadcast %cst_18 : f32 to vector<8x2xf32>
    %49 = arith.maximumf %48, %47 : vector<8x2xf32>
    %50 = arith.sitofp %c15_i32_19 : i32 to f32
    %51 = vector.broadcast %50 : f32 to vector<8x2xf32>
    %52 = arith.minimumf %51, %49 : vector<8x2xf32>
    %53 = arith.fptosi %52 : vector<8x2xf32> to vector<8x2xi32>
    %54 = tpu.iota {dimensions = array<i32: 2>} : vector<8x2x16xi32>
    %55 = tpu.iota {dimensions = array<i32: 2>} : vector<8x2x16xi32>
    %56 = vector.shape_cast %31 : vector<8x2xi32> to vector<8x2x1xi32>
    %57 = vector.broadcast %56 : vector<8x2x1xi32> to vector<8x2x16xi32>
    %58 = arith.cmpi eq, %54, %57 : vector<8x2x16xi32>
    %59 = vector.shape_cast %21 : vector<8x2xf32> to vector<8x2x1xf32>
    %cst_20 = arith.constant 0.000000e+00 : f32
    %60 = vector.shape_cast %59 : vector<8x2x1xf32> to vector<8x2x1xf32>
    %61 = vector.broadcast %60 : vector<8x2x1xf32> to vector<8x2x16xf32>
    %62 = vector.broadcast %cst_20 : f32 to vector<8x2x16xf32>
    %63 = arith.select %58, %61, %62 : vector<8x2x16xi1>, vector<8x2x16xf32>
    %64 = vector.shape_cast %39 : vector<8x2xi32> to vector<8x2x1xi32>
    %65 = vector.broadcast %64 : vector<8x2x1xi32> to vector<8x2x16xi32>
    %66 = arith.cmpi eq, %54, %65 : vector<8x2x16xi32>
    %67 = vector.shape_cast %18 : vector<8x2xf32> to vector<8x2x1xf32>
    %cst_21 = arith.constant 0.000000e+00 : f32
    %68 = vector.shape_cast %67 : vector<8x2x1xf32> to vector<8x2x1xf32>
    %69 = vector.broadcast %68 : vector<8x2x1xf32> to vector<8x2x16xf32>
    %70 = vector.broadcast %cst_21 : f32 to vector<8x2x16xf32>
    %71 = arith.select %66, %69, %70 : vector<8x2x16xi1>, vector<8x2x16xf32>
    %72 = arith.addf %63, %71 : vector<8x2x16xf32>
    %73 = vector.shape_cast %45 : vector<8x2xi32> to vector<8x2x1xi32>
    %74 = vector.broadcast %73 : vector<8x2x1xi32> to vector<8x2x16xi32>
    %75 = arith.cmpi eq, %55, %74 : vector<8x2x16xi32>
    %76 = vector.shape_cast %25 : vector<8x2xf32> to vector<8x2x1xf32>
    %cst_22 = arith.constant 0.000000e+00 : f32
    %77 = vector.shape_cast %76 : vector<8x2x1xf32> to vector<8x2x1xf32>
    %78 = vector.broadcast %77 : vector<8x2x1xf32> to vector<8x2x16xf32>
    %79 = vector.broadcast %cst_22 : f32 to vector<8x2x16xf32>
    %80 = arith.select %75, %78, %79 : vector<8x2x16xi1>, vector<8x2x16xf32>
    %81 = vector.shape_cast %53 : vector<8x2xi32> to vector<8x2x1xi32>
    %82 = vector.broadcast %81 : vector<8x2x1xi32> to vector<8x2x16xi32>
    %83 = arith.cmpi eq, %55, %82 : vector<8x2x16xi32>
    %84 = vector.shape_cast %22 : vector<8x2xf32> to vector<8x2x1xf32>
    %cst_23 = arith.constant 0.000000e+00 : f32
    %85 = vector.shape_cast %84 : vector<8x2x1xf32> to vector<8x2x1xf32>
    %86 = vector.broadcast %85 : vector<8x2x1xf32> to vector<8x2x16xf32>
    %87 = vector.broadcast %cst_23 : f32 to vector<8x2x16xf32>
    %88 = arith.select %83, %86, %87 : vector<8x2x16xi1>, vector<8x2x16xf32>
    %89 = arith.addf %80, %88 : vector<8x2x16xf32>
    %c0_24 = arith.constant 0 : index
    %c0_25 = arith.constant 0 : index
    %c0_26 = arith.constant 0 : index
    %c0_27 = arith.constant 0 : index
    %90 = vector.load %arg1[%c0_24, %c0_25, %c0_26, %c0_27] : memref<2x4x16x16xf32, #tpu.memory_space<vmem>>, vector<2x4x16x16xf32>
    %91 = vector.extract_strided_slice %90 {offsets = [0, 0, 0, 0], sizes = [2, 1, 16, 16], strides = [1, 1, 1, 1]} : vector<2x4x16x16xf32> to vector<2x1x16x16xf32>
    %92 = vector.shape_cast %91 : vector<2x1x16x16xf32> to vector<2x16x16xf32>
    %93 = vector.shape_cast %72 : vector<8x2x16xf32> to vector<8x2x1x16xf32>
    %94 = vector.shape_cast %92 : vector<2x16x16xf32> to vector<1x2x16x16xf32>
    %95 = vector.broadcast %93 : vector<8x2x1x16xf32> to vector<8x2x16x16xf32>
    %96 = vector.broadcast %94 : vector<1x2x16x16xf32> to vector<8x2x16x16xf32>
    %97 = arith.mulf %95, %96 : vector<8x2x16x16xf32>
    %cst_28 = arith.constant dense<0.000000e+00> : vector<8x2x16xf32>
    %98 = vector.multi_reduction <add>, %97, %cst_28 [3] : vector<8x2x16x16xf32> to vector<8x2x16xf32>
    %99 = arith.mulf %89, %98 : vector<8x2x16xf32>
    %cst_29 = arith.constant dense<0.000000e+00> : vector<8x2xf32>
    %100 = vector.multi_reduction <add>, %99, %cst_29 [2] : vector<8x2x16xf32> to vector<8x2xf32>
    %101 = vector.extract_strided_slice %90 {offsets = [0, 1, 0, 0], sizes = [2, 1, 16, 16], strides = [1, 1, 1, 1]} : vector<2x4x16x16xf32> to vector<2x1x16x16xf32>
    %102 = vector.shape_cast %101 : vector<2x1x16x16xf32> to vector<2x16x16xf32>
    %103 = vector.shape_cast %72 : vector<8x2x16xf32> to vector<8x2x1x16xf32>
    %104 = vector.shape_cast %102 : vector<2x16x16xf32> to vector<1x2x16x16xf32>
    %105 = vector.broadcast %103 : vector<8x2x1x16xf32> to vector<8x2x16x16xf32>
    %106 = vector.broadcast %104 : vector<1x2x16x16xf32> to vector<8x2x16x16xf32>
    %107 = arith.mulf %105, %106 : vector<8x2x16x16xf32>
    %cst_30 = arith.constant dense<0.000000e+00> : vector<8x2x16xf32>
    %108 = vector.multi_reduction <add>, %107, %cst_30 [3] : vector<8x2x16x16xf32> to vector<8x2x16xf32>
    %109 = arith.mulf %89, %108 : vector<8x2x16xf32>
    %cst_31 = arith.constant dense<0.000000e+00> : vector<8x2xf32>
    %110 = vector.multi_reduction <add>, %109, %cst_31 [2] : vector<8x2x16xf32> to vector<8x2xf32>
    %111 = vector.extract_strided_slice %90 {offsets = [0, 2, 0, 0], sizes = [2, 1, 16, 16], strides = [1, 1, 1, 1]} : vector<2x4x16x16xf32> to vector<2x1x16x16xf32>
    %112 = vector.shape_cast %111 : vector<2x1x16x16xf32> to vector<2x16x16xf32>
    %113 = vector.shape_cast %72 : vector<8x2x16xf32> to vector<8x2x1x16xf32>
    %114 = vector.shape_cast %112 : vector<2x16x16xf32> to vector<1x2x16x16xf32>
    %115 = vector.broadcast %113 : vector<8x2x1x16xf32> to vector<8x2x16x16xf32>
    %116 = vector.broadcast %114 : vector<1x2x16x16xf32> to vector<8x2x16x16xf32>
    %117 = arith.mulf %115, %116 : vector<8x2x16x16xf32>
    %cst_32 = arith.constant dense<0.000000e+00> : vector<8x2x16xf32>
    %118 = vector.multi_reduction <add>, %117, %cst_32 [3] : vector<8x2x16x16xf32> to vector<8x2x16xf32>
    %119 = arith.mulf %89, %118 : vector<8x2x16xf32>
    %cst_33 = arith.constant dense<0.000000e+00> : vector<8x2xf32>
    %120 = vector.multi_reduction <add>, %119, %cst_33 [2] : vector<8x2x16xf32> to vector<8x2xf32>
    %121 = vector.extract_strided_slice %90 {offsets = [0, 3, 0, 0], sizes = [2, 1, 16, 16], strides = [1, 1, 1, 1]} : vector<2x4x16x16xf32> to vector<2x1x16x16xf32>
    %122 = vector.shape_cast %121 : vector<2x1x16x16xf32> to vector<2x16x16xf32>
    %123 = vector.shape_cast %72 : vector<8x2x16xf32> to vector<8x2x1x16xf32>
    %124 = vector.shape_cast %122 : vector<2x16x16xf32> to vector<1x2x16x16xf32>
    %125 = vector.broadcast %123 : vector<8x2x1x16xf32> to vector<8x2x16x16xf32>
    %126 = vector.broadcast %124 : vector<1x2x16x16xf32> to vector<8x2x16x16xf32>
    %127 = arith.mulf %125, %126 : vector<8x2x16x16xf32>
    %cst_34 = arith.constant dense<0.000000e+00> : vector<8x2x16xf32>
    %128 = vector.multi_reduction <add>, %127, %cst_34 [3] : vector<8x2x16x16xf32> to vector<8x2x16xf32>
    %129 = arith.mulf %89, %128 : vector<8x2x16xf32>
    %cst_35 = arith.constant dense<0.000000e+00> : vector<8x2xf32>
    %130 = vector.multi_reduction <add>, %129, %cst_35 [2] : vector<8x2x16xf32> to vector<8x2xf32>
    %131 = vector.shape_cast %100 : vector<8x2xf32> to vector<8x2x1xf32>
    %132 = vector.shape_cast %110 : vector<8x2xf32> to vector<8x2x1xf32>
    %133 = vector.shape_cast %120 : vector<8x2xf32> to vector<8x2x1xf32>
    %134 = vector.shape_cast %130 : vector<8x2xf32> to vector<8x2x1xf32>
    %135 = tpu.concatenate %131, %132, %133, %134 in 2 : vector<8x2x1xf32>, vector<8x2x1xf32>, vector<8x2x1xf32>, vector<8x2x1xf32> -> vector<8x2x4xf32>
    %c0_36 = arith.constant 0 : index
    %c0_37 = arith.constant 0 : index
    %c0_38 = arith.constant 0 : index
    %136 = vector.load %arg2[%c0_36, %c0_37, %c0_38] : memref<8x2x4xf32, #tpu.memory_space<vmem>>, vector<8x2x4xf32>
    tpu.vector_store %arg2[%c0_36, %c0_37, %c0_38], %135 {strides = array<i32>} : memref<8x2x4xf32, #tpu.memory_space<vmem>>, vector<8x2x4xf32>,
    return
  }
}

</mosaic_0001>

<llo_original>
// kernel: image_feature_extractor_forward.1
$region0: #{image_feature_extractor_forward.1}
  #allocation0 [shape = 'u32[]', space=smem, size = 0x4, offset = 0x4, fixed_abs, tag = 'smem constant byte address 0x4 - core index']
  #allocation1 [shape = 'u32[144,128]{1,0:T(1,128)}', space=vmem, size = 0x12000, scoped, tag = 'internal scratch']
  %s0 = inlined_call_operand.vmem [shape: f32[2,8,2], index: 0, kind: input, shape index: {}]
  %s1 = inlined_call_operand.hbm [shape: f32[2,4,16,16], index: 1, kind: input, shape index: {}]
  %s2 = inlined_call_operand.vmem [shape: f32[8,2,4], index: 2, kind: output, shape index: {}]
  %s3 = sld [smem:[#allocation0]]
  $region22: #{image_feature_extractor_forward.1} parent=0
    _
  %s5 = ssub.s32 1, %s3
  %s6 = scalar_select 0, %s5, %s3
  $region1: #{image_feature_extractor_forward.1} parent=0
    #allocation2 [shape = 'u8[65536]{0}', space=vmem, size = 0x10000, scoped, tag = 'input window, operand 1, single buffered']
    #allocation3 [shape = 's32[1]{0}', space=sflag, size = 0x4, scoped, tag = 'scoped memory for image_feature_extractor_forward.1']
    %7 = vsyncpa [#allocation3], 0
    // Predicated region
    $region2: #{image_feature_extractor_forward.1} parent=1 // pred_check
      _
    $region3: #{image_feature_extractor_forward.1} parent=1 // pred_check_branch
      %9 = sbr.rel (0) target = $region5
    $region4: #{image_feature_extractor_forward.1} parent=1 // pred_region
      _
    $region5: #{image_feature_extractor_forward.1} parent=1 // pred_fallthru
      _
    // Predicated region
    $region6: #{image_feature_extractor_forward.1} parent=1 // pred_check
      _
    $region7: #{image_feature_extractor_forward.1} parent=1 // pred_check_branch
      %11 = sbr.rel (0) target = $region9
    $region8: #{image_feature_extractor_forward.1} parent=1 // pred_region
      %s13 = ssub.s32 2048, 2048
      %14 = vsyncadd [#allocation3], %s13
      %s15 = sshll.u32 [#allocation2], 4
      %s16 = int_to_ptr.vmem [resolvable:$true] %s15
      %21 = dma.hbm_to_vmem [thread:$0]  %s1, 2048, %s16, [#allocation3], 128, 128, 8
    $region9: #{image_feature_extractor_forward.1} parent=1 // pred_fallthru
      _
    // Predicated region
    $region10: #{image_feature_extractor_forward.1} parent=1 // pred_check
      _
    $region11: #{image_feature_extractor_forward.1} parent=1 // pred_check_branch
      %23 = sbr.rel (0) target = $region13
    $region12: #{image_feature_extractor_forward.1} parent=1 // pred_region
      %24 = dma.done [#allocation3], 2048
    $region13: #{image_feature_extractor_forward.1} parent=1 // pred_fallthru
      _
    %v25 = vld [vmem:[%s0] sm:$0xff]
    %s26 = scalar_lea.vmem %s0, 8
    %v27 = vld [vmem:[%s26] sm:$0xff]
    %v28 = vadd.f32 %v25, 1.0
    %v29 = vmul.f32 %v28, 0.5
    %v30 = vmul.f32 %v29, 15.0
    %v31 = vadd.f32 %v27, 1.0
    %v32 = vmul.f32 %v31, 0.5
    %v33 = vmul.f32 %v32, 15.0
    %v34 = vfloor.f32 %v30
    %v35 = vfloor.f32 %v33
    %v36 = vsub.f32 %v30, %v34
    %v37 = vadd.f32 %v34, 1.0
    %v38 = vsub.f32 %v37, %v30
    %v39 = vsub.f32 %v33, %v35
    %v40 = vadd.f32 %v35, 1.0
    %v41 = vsub.f32 %v40, %v33
    %v42 = vmax.f32 %v34, 0.0
    %v43 = vmin.f32 %v42, 15.0
    %v44 = vcvt.f32.s32.to.zero.pseudo %v43
    %v45 = vmax.f32 %v37, 0.0
    %v46 = vmin.f32 %v45, 15.0
    %v47 = vcvt.f32.s32.to.zero.pseudo %v46
    %v48 = vmax.f32 %v35, 0.0
    %v49 = vmin.f32 %v48, 15.0
    %v50 = vcvt.f32.s32.to.zero.pseudo %v49
    %v51 = vmax.f32 %v40, 0.0
    %v52 = vmin.f32 %v51, 15.0
    %v53 = vcvt.f32.s32.to.zero.pseudo %v52
    %v54 = vlaneseq
    %v55 = vand.u32 %v54, 127
    %v56 = vlaneseq
    %v57 = vshrl.u32 %v56, 7
    %v58 = vsub.s32 0, %v57
    %v59 = vrot.slane %v44, %v58
    %61 = vbcast.lane.b32.xlu0 %v59, 256
    %v62 = vpop.permute.xlu0 %61
    %v63 = vlaneseq
    %v64 = vshrl.u32 %v63, 7
    %v65 = vsub.s32 1, %v64
    %v66 = vrot.slane %v44, %v65
    %68 = vbcast.lane.b32.xlu0 %v66, 256
    %v69 = vpop.permute.xlu0 %68
    %v70 = vlaneseq
    %v71 = vshrl.u32 %v70, 7
    %v72 = vsub.s32 2, %v71
    %v73 = vrot.slane %v44, %v72
    %75 = vbcast.lane.b32.xlu0 %v73, 256
    %v76 = vpop.permute.xlu0 %75
    %v77 = vlaneseq
    %v78 = vshrl.u32 %v77, 7
    %v79 = vsub.s32 3, %v78
    %v80 = vrot.slane %v44, %v79
    %82 = vbcast.lane.b32.xlu0 %v80, 256
    %v83 = vpop.permute.xlu0 %82
    %v84 = vlaneseq
    %v85 = vshrl.u32 %v84, 7
    %v86 = vsub.s32 4, %v85
    %v87 = vrot.slane %v44, %v86
    %89 = vbcast.lane.b32.xlu0 %v87, 256
    %v90 = vpop.permute.xlu0 %89
    %v91 = vlaneseq
    %v92 = vshrl.u32 %v91, 7
    %v93 = vsub.s32 5, %v92
    %v94 = vrot.slane %v44, %v93
    %96 = vbcast.lane.b32.xlu0 %v94, 256
    %v97 = vpop.permute.xlu0 %96
    %v98 = vlaneseq
    %v99 = vshrl.u32 %v98, 7
    %v100 = vsub.s32 6, %v99
    %v101 = vrot.slane %v44, %v100
    %103 = vbcast.lane.b32.xlu0 %v101, 256
    %v104 = vpop.permute.xlu0 %103
    %v105 = vlaneseq
    %v106 = vshrl.u32 %v105, 7
    %v107 = vsub.s32 7, %v106
    %v108 = vrot.slane %v44, %v107
    %110 = vbcast.lane.b32.xlu0 %v108, 256
    %v111 = vpop.permute.xlu0 %110
    %vm112 = vcmp.eq.s32.totalorder %v55, %v62
    %vm113 = vcmp.eq.s32.totalorder %v55, %v69
    %vm114 = vcmp.eq.s32.totalorder %v55, %v76
    %vm115 = vcmp.eq.s32.totalorder %v55, %v83
    %vm116 = vcmp.eq.s32.totalorder %v55, %v90
    %vm117 = vcmp.eq.s32.totalorder %v55, %v97
    %vm118 = vcmp.eq.s32.totalorder %v55, %v104
    %vm119 = vcmp.eq.s32.totalorder %v55, %v111
    %v120 = vlaneseq
    %v121 = vshrl.u32 %v120, 7
    %v122 = vsub.s32 0, %v121
    %v123 = vrot.slane %v38, %v122
    %125 = vbcast.lane.b32.xlu0 %v123, 256
    %v126 = vpop.permute.xlu0 %125
    %v127 = vlaneseq
    %v128 = vshrl.u32 %v127, 7
    %v129 = vsub.s32 1, %v128
    %v130 = vrot.slane %v38, %v129
    %132 = vbcast.lane.b32.xlu0 %v130, 256
    %v133 = vpop.permute.xlu0 %132
    %v134 = vlaneseq
    %v135 = vshrl.u32 %v134, 7
    %v136 = vsub.s32 2, %v135
    %v137 = vrot.slane %v38, %v136
    %139 = vbcast.lane.b32.xlu0 %v137, 256
    %v140 = vpop.permute.xlu0 %139
    %v141 = vlaneseq
    %v142 = vshrl.u32 %v141, 7
    %v143 = vsub.s32 3, %v142
    %v144 = vrot.slane %v38, %v143
    %146 = vbcast.lane.b32.xlu0 %v144, 256
    %v147 = vpop.permute.xlu0 %146
    %v148 = vlaneseq
    %v149 = vshrl.u32 %v148, 7
    %v150 = vsub.s32 4, %v149
    %v151 = vrot.slane %v38, %v150
    %153 = vbcast.lane.b32.xlu0 %v151, 256
    %v154 = vpop.permute.xlu0 %153
    %v155 = vlaneseq
    %v156 = vshrl.u32 %v155, 7
    %v157 = vsub.s32 5, %v156
    %v158 = vrot.slane %v38, %v157
    %160 = vbcast.lane.b32.xlu0 %v158, 256
    %v161 = vpop.permute.xlu0 %160
    %v162 = vlaneseq
    %v163 = vshrl.u32 %v162, 7
    %v164 = vsub.s32 6, %v163
    %v165 = vrot.slane %v38, %v164
    %167 = vbcast.lane.b32.xlu0 %v165, 256
    %v168 = vpop.permute.xlu0 %167
    %v169 = vlaneseq
    %v170 = vshrl.u32 %v169, 7
    %v171 = vsub.s32 7, %v170
    %v172 = vrot.slane %v38, %v171
    %174 = vbcast.lane.b32.xlu0 %v172, 256
    %v175 = vpop.permute.xlu0 %174
    %v176 = vsel %vm112, %v126, 0.0
    %v177 = vsel %vm113, %v133, 0.0
    %v178 = vsel %vm114, %v140, 0.0
    %v179 = vsel %vm115, %v147, 0.0
    %v180 = vsel %vm116, %v154, 0.0
    %v181 = vsel %vm117, %v161, 0.0
    %v182 = vsel %vm118, %v168, 0.0
    %v183 = vsel %vm119, %v175, 0.0
    %v184 = vlaneseq
    %v185 = vshrl.u32 %v184, 7
    %v186 = vsub.s32 0, %v185
    %v187 = vrot.slane %v47, %v186
    %189 = vbcast.lane.b32.xlu0 %v187, 256
    %v190 = vpop.permute.xlu0 %189
    %v191 = vlaneseq
    %v192 = vshrl.u32 %v191, 7
    %v193 = vsub.s32 1, %v192
    %v194 = vrot.slane %v47, %v193
    %196 = vbcast.lane.b32.xlu0 %v194, 256
    %v197 = vpop.permute.xlu0 %196
    %v198 = vlaneseq
    %v199 = vshrl.u32 %v198, 7
    %v200 = vsub.s32 2, %v199
    %v201 = vrot.slane %v47, %v200
    %203 = vbcast.lane.b32.xlu0 %v201, 256
    %v204 = vpop.permute.xlu0 %203
    %v205 = vlaneseq
    %v206 = vshrl.u32 %v205, 7
    %v207 = vsub.s32 3, %v206
    %v208 = vrot.slane %v47, %v207
    %210 = vbcast.lane.b32.xlu0 %v208, 256
    %v211 = vpop.permute.xlu0 %210
    %v212 = vlaneseq
    %v213 = vshrl.u32 %v212, 7
    %v214 = vsub.s32 4, %v213
    %v215 = vrot.slane %v47, %v214
    %217 = vbcast.lane.b32.xlu0 %v215, 256
    %v218 = vpop.permute.xlu0 %217
    %v219 = vlaneseq
    %v220 = vshrl.u32 %v219, 7
    %v221 = vsub.s32 5, %v220
    %v222 = vrot.slane %v47, %v221
    %224 = vbcast.lane.b32.xlu0 %v222, 256
    %v225 = vpop.permute.xlu0 %224
    %v226 = vlaneseq
    %v227 = vshrl.u32 %v226, 7
    %v228 = vsub.s32 6, %v227
    %v229 = vrot.slane %v47, %v228
    %231 = vbcast.lane.b32.xlu0 %v229, 256
    %v232 = vpop.permute.xlu0 %231
    %v233 = vlaneseq
    %v234 = vshrl.u32 %v233, 7
    %v235 = vsub.s32 7, %v234
    %v236 = vrot.slane %v47, %v235
    %238 = vbcast.lane.b32.xlu0 %v236, 256
    %v239 = vpop.permute.xlu0 %238
    %vm240 = vcmp.eq.s32.totalorder %v55, %v190
    %vm241 = vcmp.eq.s32.totalorder %v55, %v197
    %vm242 = vcmp.eq.s32.totalorder %v55, %v204
    %vm243 = vcmp.eq.s32.totalorder %v55, %v211
    %vm244 = vcmp.eq.s32.totalorder %v55, %v218
    %vm245 = vcmp.eq.s32.totalorder %v55, %v225
    %vm246 = vcmp.eq.s32.totalorder %v55, %v232
    %vm247 = vcmp.eq.s32.totalorder %v55, %v239
    %v248 = vlaneseq
    %v249 = vshrl.u32 %v248, 7
    %v250 = vsub.s32 0, %v249
    %v251 = vrot.slane %v36, %v250
    %253 = vbcast.lane.b32.xlu0 %v251, 256
    %v254 = vpop.permute.xlu0 %253
    %v255 = vlaneseq
    %v256 = vshrl.u32 %v255, 7
    %v257 = vsub.s32 1, %v256
    %v258 = vrot.slane %v36, %v257
    %260 = vbcast.lane.b32.xlu0 %v258, 256
    %v261 = vpop.permute.xlu0 %260
    %v262 = vlaneseq
    %v263 = vshrl.u32 %v262, 7
    %v264 = vsub.s32 2, %v263
    %v265 = vrot.slane %v36, %v264
    %267 = vbcast.lane.b32.xlu0 %v265, 256
    %v268 = vpop.permute.xlu0 %267
    %v269 = vlaneseq
    %v270 = vshrl.u32 %v269, 7
    %v271 = vsub.s32 3, %v270
    %v272 = vrot.slane %v36, %v271
    %274 = vbcast.lane.b32.xlu0 %v272, 256
    %v275 = vpop.permute.xlu0 %274
    %v276 = vlaneseq
    %v277 = vshrl.u32 %v276, 7
    %v278 = vsub.s32 4, %v277
    %v279 = vrot.slane %v36, %v278
    %281 = vbcast.lane.b32.xlu0 %v279, 256
    %v282 = vpop.permute.xlu0 %281
    %v283 = vlaneseq
    %v284 = vshrl.u32 %v283, 7
    %v285 = vsub.s32 5, %v284
    %v286 = vrot.slane %v36, %v285
    %288 = vbcast.lane.b32.xlu0 %v286, 256
    %v289 = vpop.permute.xlu0 %288
    %v290 = vlaneseq
    %v291 = vshrl.u32 %v290, 7
    %v292 = vsub.s32 6, %v291
    %v293 = vrot.slane %v36, %v292
    %295 = vbcast.lane.b32.xlu0 %v293, 256
    %v296 = vpop.permute.xlu0 %295
    %v297 = vlaneseq
    %v298 = vshrl.u32 %v297, 7
    %v299 = vsub.s32 7, %v298
    %v300 = vrot.slane %v36, %v299
    %302 = vbcast.lane.b32.xlu0 %v300, 256
    %v303 = vpop.permute.xlu0 %302
    %v304 = vsel %vm240, %v254, 0.0
    %v305 = vsel %vm241, %v261, 0.0
    %v306 = vsel %vm242, %v268, 0.0
    %v307 = vsel %vm243, %v275, 0.0
    %v308 = vsel %vm244, %v282, 0.0
    %v309 = vsel %vm245, %v289, 0.0
    %v310 = vsel %vm246, %v296, 0.0
    %v311 = vsel %vm247, %v303, 0.0
    %v312 = vadd.f32 %v176, %v304
    %v313 = vadd.f32 %v177, %v305
    %v314 = vadd.f32 %v178, %v306
    %v315 = vadd.f32 %v179, %v307
    %v316 = vadd.f32 %v180, %v308
    %v317 = vadd.f32 %v181, %v309
    %v318 = vadd.f32 %v182, %v310
    %v319 = vadd.f32 %v183, %v311
    %v320 = vlaneseq
    %v321 = vshrl.u32 %v320, 7
    %v322 = vsub.s32 0, %v321
    %v323 = vrot.slane %v50, %v322
    %325 = vbcast.lane.b32.xlu0 %v323, 256
    %v326 = vpop.permute.xlu0 %325
    %v327 = vlaneseq
    %v328 = vshrl.u32 %v327, 7
    %v329 = vsub.s32 1, %v328
    %v330 = vrot.slane %v50, %v329
    %332 = vbcast.lane.b32.xlu0 %v330, 256
    %v333 = vpop.permute.xlu0 %332
    %v334 = vlaneseq
    %v335 = vshrl.u32 %v334, 7
    %v336 = vsub.s32 2, %v335
    %v337 = vrot.slane %v50, %v336
    %339 = vbcast.lane.b32.xlu0 %v337, 256
    %v340 = vpop.permute.xlu0 %339
    %v341 = vlaneseq
    %v342 = vshrl.u32 %v341, 7
    %v343 = vsub.s32 3, %v342
    %v344 = vrot.slane %v50, %v343
    %346 = vbcast.lane.b32.xlu0 %v344, 256
    %v347 = vpop.permute.xlu0 %346
    %v348 = vlaneseq
    %v349 = vshrl.u32 %v348, 7
    %v350 = vsub.s32 4, %v349
    %v351 = vrot.slane %v50, %v350
    %353 = vbcast.lane.b32.xlu0 %v351, 256
    %v354 = vpop.permute.xlu0 %353
    %v355 = vlaneseq
    %v356 = vshrl.u32 %v355, 7
    %v357 = vsub.s32 5, %v356
    %v358 = vrot.slane %v50, %v357
    %360 = vbcast.lane.b32.xlu0 %v358, 256
    %v361 = vpop.permute.xlu0 %360
    %v362 = vlaneseq
    %v363 = vshrl.u32 %v362, 7
    %v364 = vsub.s32 6, %v363
    %v365 = vrot.slane %v50, %v364
    %367 = vbcast.lane.b32.xlu0 %v365, 256
    %v368 = vpop.permute.xlu0 %367
    %v369 = vlaneseq
    %v370 = vshrl.u32 %v369, 7
    %v371 = vsub.s32 7, %v370
    %v372 = vrot.slane %v50, %v371
    %374 = vbcast.lane.b32.xlu0 %v372, 256
    %v375 = vpop.permute.xlu0 %374
    %vm376 = vcmp.eq.s32.totalorder %v55, %v326
    %vm377 = vcmp.eq.s32.totalorder %v55, %v333
    %vm378 = vcmp.eq.s32.totalorder %v55, %v340
    %vm379 = vcmp.eq.s32.totalorder %v55, %v347
    %vm380 = vcmp.eq.s32.totalorder %v55, %v354
    %vm381 = vcmp.eq.s32.totalorder %v55, %v361
    %vm382 = vcmp.eq.s32.totalorder %v55, %v368
    %vm383 = vcmp.eq.s32.totalorder %v55, %v375
    %v384 = vlaneseq
    %v385 = vshrl.u32 %v384, 7
    %v386 = vsub.s32 0, %v385
    %v387 = vrot.slane %v41, %v386
    %389 = vbcast.lane.b32.xlu0 %v387, 256
    %v390 = vpop.permute.xlu0 %389
    %v391 = vlaneseq
    %v392 = vshrl.u32 %v391, 7
    %v393 = vsub.s32 1, %v392
    %v394 = vrot.slane %v41, %v393
    %396 = vbcast.lane.b32.xlu0 %v394, 256
    %v397 = vpop.permute.xlu0 %396
    %v398 = vlaneseq
    %v399 = vshrl.u32 %v398, 7
    %v400 = vsub.s32 2, %v399
    %v401 = vrot.slane %v41, %v400
    %403 = vbcast.lane.b32.xlu0 %v401, 256
    %v404 = vpop.permute.xlu0 %403
    %v405 = vlaneseq
    %v406 = vshrl.u32 %v405, 7
    %v407 = vsub.s32 3, %v406
    %v408 = vrot.slane %v41, %v407
    %410 = vbcast.lane.b32.xlu0 %v408, 256
    %v411 = vpop.permute.xlu0 %410
    %v412 = vlaneseq
    %v413 = vshrl.u32 %v412, 7
    %v414 = vsub.s32 4, %v413
    %v415 = vrot.slane %v41, %v414
    %417 = vbcast.lane.b32.xlu0 %v415, 256
    %v418 = vpop.permute.xlu0 %417
    %v419 = vlaneseq
    %v420 = vshrl.u32 %v419, 7
    %v421 = vsub.s32 5, %v420
    %v422 = vrot.slane %v41, %v421
    %424 = vbcast.lane.b32.xlu0 %v422, 256
    %v425 = vpop.permute.xlu0 %424
    %v426 = vlaneseq
    %v427 = vshrl.u32 %v426, 7
    %v428 = vsub.s32 6, %v427
    %v429 = vrot.slane %v41, %v428
    %431 = vbcast.lane.b32.xlu0 %v429, 256
    %v432 = vpop.permute.xlu0 %431
    %v433 = vlaneseq
    %v434 = vshrl.u32 %v433, 7
    %v435 = vsub.s32 7, %v434
    %v436 = vrot.slane %v41, %v435
    %438 = vbcast.lane.b32.xlu0 %v436, 256
    %v439 = vpop.permute.xlu0 %438
    %v440 = vsel %vm376, %v390, 0.0
    %v441 = vsel %vm377, %v397, 0.0
    %v442 = vsel %vm378, %v404, 0.0
    %v443 = vsel %vm379, %v411, 0.0
    %v444 = vsel %vm380, %v418, 0.0
    %v445 = vsel %vm381, %v425, 0.0
    %v446 = vsel %vm382, %v432, 0.0
    %v447 = vsel %vm383, %v439, 0.0
    %v448 = vlaneseq
    %v449 = vshrl.u32 %v448, 7
    %v450 = vsub.s32 0, %v449
    %v451 = vrot.slane %v53, %v450
    %453 = vbcast.lane.b32.xlu0 %v451, 256
    %v454 = vpop.permute.xlu0 %453
    %v455 = vlaneseq
    %v456 = vshrl.u32 %v455, 7
    %v457 = vsub.s32 1, %v456
    %v458 = vrot.slane %v53, %v457
    %460 = vbcast.lane.b32.xlu0 %v458, 256
    %v461 = vpop.permute.xlu0 %460
    %v462 = vlaneseq
    %v463 = vshrl.u32 %v462, 7
    %v464 = vsub.s32 2, %v463
    %v465 = vrot.slane %v53, %v464
    %467 = vbcast.lane.b32.xlu0 %v465, 256
    %v468 = vpop.permute.xlu0 %467
    %v469 = vlaneseq
    %v470 = vshrl.u32 %v469, 7
    %v471 = vsub.s32 3, %v470
    %v472 = vrot.slane %v53, %v471
    %474 = vbcast.lane.b32.xlu0 %v472, 256
    %v475 = vpop.permute.xlu0 %474
    %v476 = vlaneseq
    %v477 = vshrl.u32 %v476, 7
    %v478 = vsub.s32 4, %v477
    %v479 = vrot.slane %v53, %v478
    %481 = vbcast.lane.b32.xlu0 %v479, 256
    %v482 = vpop.permute.xlu0 %481
    %v483 = vlaneseq
    %v484 = vshrl.u32 %v483, 7
    %v485 = vsub.s32 5, %v484
    %v486 = vrot.slane %v53, %v485
    %488 = vbcast.lane.b32.xlu0 %v486, 256
    %v489 = vpop.permute.xlu0 %488
    %v490 = vlaneseq
    %v491 = vshrl.u32 %v490, 7
    %v492 = vsub.s32 6, %v491
    %v493 = vrot.slane %v53, %v492
    %495 = vbcast.lane.b32.xlu0 %v493, 256
    %v496 = vpop.permute.xlu0 %495
    %v497 = vlaneseq
    %v498 = vshrl.u32 %v497, 7
    %v499 = vsub.s32 7, %v498
    %v500 = vrot.slane %v53, %v499
    %502 = vbcast.lane.b32.xlu0 %v500, 256
    %v503 = vpop.permute.xlu0 %502
    %vm504 = vcmp.eq.s32.totalorder %v55, %v454
    %vm505 = vcmp.eq.s32.totalorder %v55, %v461
    %vm506 = vcmp.eq.s32.totalorder %v55, %v468
    %vm507 = vcmp.eq.s32.totalorder %v55, %v475
    %vm508 = vcmp.eq.s32.totalorder %v55, %v482
    %vm509 = vcmp.eq.s32.totalorder %v55, %v489
    %vm510 = vcmp.eq.s32.totalorder %v55, %v496
    %vm511 = vcmp.eq.s32.totalorder %v55, %v503
    %v512 = vlaneseq
    %v513 = vshrl.u32 %v512, 7
    %v514 = vsub.s32 0, %v513
    %v515 = vrot.slane %v39, %v514
    %517 = vbcast.lane.b32.xlu0 %v515, 256
    %v518 = vpop.permute.xlu0 %517
    %v519 = vlaneseq
    %v520 = vshrl.u32 %v519, 7
    %v521 = vsub.s32 1, %v520
    %v522 = vrot.slane %v39, %v521
    %524 = vbcast.lane.b32.xlu0 %v522, 256
    %v525 = vpop.permute.xlu0 %524
    %v526 = vlaneseq
    %v527 = vshrl.u32 %v526, 7
    %v528 = vsub.s32 2, %v527
    %v529 = vrot.slane %v39, %v528
    %531 = vbcast.lane.b32.xlu0 %v529, 256
    %v532 = vpop.permute.xlu0 %531
    %v533 = vlaneseq
    %v534 = vshrl.u32 %v533, 7
    %v535 = vsub.s32 3, %v534
    %v536 = vrot.slane %v39, %v535
    %538 = vbcast.lane.b32.xlu0 %v536, 256
    %v539 = vpop.permute.xlu0 %538
    %v540 = vlaneseq
    %v541 = vshrl.u32 %v540, 7
    %v542 = vsub.s32 4, %v541
    %v543 = vrot.slane %v39, %v542
    %545 = vbcast.lane.b32.xlu0 %v543, 256
    %v546 = vpop.permute.xlu0 %545
    %v547 = vlaneseq
    %v548 = vshrl.u32 %v547, 7
    %v549 = vsub.s32 5, %v548
    %v550 = vrot.slane %v39, %v549
    %552 = vbcast.lane.b32.xlu0 %v550, 256
    %v553 = vpop.permute.xlu0 %552
    %v554 = vlaneseq
    %v555 = vshrl.u32 %v554, 7
    %v556 = vsub.s32 6, %v555
    %v557 = vrot.slane %v39, %v556
    %559 = vbcast.lane.b32.xlu0 %v557, 256
    %v560 = vpop.permute.xlu0 %559
    %v561 = vlaneseq
    %v562 = vshrl.u32 %v561, 7
    %v563 = vsub.s32 7, %v562
    %v564 = vrot.slane %v39, %v563
    %566 = vbcast.lane.b32.xlu0 %v564, 256
    %v567 = vpop.permute.xlu0 %566
    %v568 = vsel %vm504, %v518, 0.0
    %v569 = vsel %vm505, %v525, 0.0
    %v570 = vsel %vm506, %v532, 0.0
    %v571 = vsel %vm507, %v539, 0.0
    %v572 = vsel %vm508, %v546, 0.0
    %v573 = vsel %vm509, %v553, 0.0
    %v574 = vsel %vm510, %v560, 0.0
    %v575 = vsel %vm511, %v567, 0.0
    %v576 = vadd.f32 %v440, %v568
    %v577 = vadd.f32 %v441, %v569
    %v578 = vadd.f32 %v442, %v570
    %v579 = vadd.f32 %v443, %v571
    %v580 = vadd.f32 %v444, %v572
    %v581 = vadd.f32 %v445, %v573
    %v582 = vadd.f32 %v446, %v574
    %v583 = vadd.f32 %v447, %v575
    %v584 = vld [vmem:[#allocation2] sm:$0xff]
    %v585 = vld [vmem:[#allocation2 + $0x8] sm:$0xff]
    %v586 = vld [vmem:[#allocation2 + $0x10] sm:$0xff]
    %v587 = vld [vmem:[#allocation2 + $0x18] sm:$0xff]
    %v588 = vld [vmem:[#allocation2 + $0x20] sm:$0xff]
    %v589 = vld [vmem:[#allocation2 + $0x28] sm:$0xff]
    %v590 = vld [vmem:[#allocation2 + $0x30] sm:$0xff]
    %v591 = vld [vmem:[#allocation2 + $0x38] sm:$0xff]
    %v592 = vld [vmem:[#allocation2 + $0x40] sm:$0xff]
    %v593 = vld [vmem:[#allocation2 + $0x48] sm:$0xff]
    %v594 = vld [vmem:[#allocation2 + $0x50] sm:$0xff]
    %v595 = vld [vmem:[#allocation2 + $0x58] sm:$0xff]
    %v596 = vld [vmem:[#allocation2 + $0x60] sm:$0xff]
    %v597 = vld [vmem:[#allocation2 + $0x68] sm:$0xff]
    %v598 = vld [vmem:[#allocation2 + $0x70] sm:$0xff]
    %v599 = vld [vmem:[#allocation2 + $0x78] sm:$0xff]
    %v609 = vunpack.c.l.s4 1966171168
    %v610 = vunpack.c.0.s8 %v609
    %v611 = vlaneseq
    %v612 = vshrl.u32 %v611, 7
    %v613 = vsub.s32 %v610, %v612
    %v614 = vrot.slane %v312, %v613
    %v615 = vcombine.high %v614, %v614
    %v617 = vunpack.c.l.s4 1966171168
    %v618 = vunpack.c.0.s8 %v617
    %v619 = vlaneseq
    %v620 = vshrl.u32 %v619, 7
    %v621 = vsub.s32 %v618, %v620
    %v622 = vrot.slane %v614, %v621
    %v624 = vunpack.c.l.s4 1966171168
    %v625 = vunpack.c.0.s8 %v624
    %v626 = vlaneseq
    %v627 = vshrl.u32 %v626, 7
    %v628 = vsub.s32 %v625, %v627
    %v629 = vrot.slane %v615, %v628
    %v631 = vunpack.c.l.s4 1966171168
    %v632 = vunpack.c.0.s8 %v631
    %v633 = vlaneseq
    %v634 = vshrl.u32 %v633, 7
    %v635 = vsub.s32 %v632, %v634
    %v636 = vrot.slane %v313, %v635
    %v637 = vcombine.high %v636, %v636
    %v639 = vunpack.c.l.s4 1966171168
    %v640 = vunpack.c.0.s8 %v639
    %v641 = vlaneseq
    %v642 = vshrl.u32 %v641, 7
    %v643 = vsub.s32 %v640, %v642
    %v644 = vrot.slane %v636, %v643
    %v646 = vunpack.c.l.s4 1966171168
    %v647 = vunpack.c.0.s8 %v646
    %v648 = vlaneseq
    %v649 = vshrl.u32 %v648, 7
    %v650 = vsub.s32 %v647, %v649
    %v651 = vrot.slane %v637, %v650
    %v653 = vunpack.c.l.s4 1966171168
    %v654 = vunpack.c.0.s8 %v653
    %v655 = vlaneseq
    %v656 = vshrl.u32 %v655, 7
    %v657 = vsub.s32 %v654, %v656
    %v658 = vrot.slane %v314, %v657
    %v659 = vcombine.high %v658, %v658
    %v661 = vunpack.c.l.s4 1966171168
    %v662 = vunpack.c.0.s8 %v661
    %v663 = vlaneseq
    %v664 = vshrl.u32 %v663, 7
    %v665 = vsub.s32 %v662, %v664
    %v666 = vrot.slane %v658, %v665
    %v668 = vunpack.c.l.s4 1966171168
    %v669 = vunpack.c.0.s8 %v668
    %v670 = vlaneseq
    %v671 = vshrl.u32 %v670, 7
    %v672 = vsub.s32 %v669, %v671
    %v673 = vrot.slane %v659, %v672
    %v675 = vunpack.c.l.s4 1966171168
    %v676 = vunpack.c.0.s8 %v675
    %v677 = vlaneseq
    %v678 = vshrl.u32 %v677, 7
    %v679 = vsub.s32 %v676, %v678
    %v680 = vrot.slane %v315, %v679
    %v681 = vcombine.high %v680, %v680
    %v683 = vunpack.c.l.s4 1966171168
    %v684 = vunpack.c.0.s8 %v683
    %v685 = vlaneseq
    %v686 = vshrl.u32 %v685, 7
    %v687 = vsub.s32 %v684, %v686
    %v688 = vrot.slane %v680, %v687
    %v690 = vunpack.c.l.s4 1966171168
    %v691 = vunpack.c.0.s8 %v690
    %v692 = vlaneseq
    %v693 = vshrl.u32 %v692, 7
    %v694 = vsub.s32 %v691, %v693
    %v695 = vrot.slane %v681, %v694
    %v697 = vunpack.c.l.s4 1966171168
    %v698 = vunpack.c.0.s8 %v697
    %v699 = vlaneseq
    %v700 = vshrl.u32 %v699, 7
    %v701 = vsub.s32 %v698, %v700
    %v702 = vrot.slane %v316, %v701
    %v703 = vcombine.high %v702, %v702
    %v705 = vunpack.c.l.s4 1966171168
    %v706 = vunpack.c.0.s8 %v705
    %v707 = vlaneseq
    %v708 = vshrl.u32 %v707, 7
    %v709 = vsub.s32 %v706, %v708
    %v710 = vrot.slane %v702, %v709
    %v712 = vunpack.c.l.s4 1966171168
    %v713 = vunpack.c.0.s8 %v712
    %v714 = vlaneseq
    %v715 = vshrl.u32 %v714, 7
    %v716 = vsub.s32 %v713, %v715
    %v717 = vrot.slane %v703, %v716
    %v719 = vunpack.c.l.s4 1966171168
    %v720 = vunpack.c.0.s8 %v719
    %v721 = vlaneseq
    %v722 = vshrl.u32 %v721, 7
    %v723 = vsub.s32 %v720, %v722
    %v724 = vrot.slane %v317, %v723
    %v725 = vcombine.high %v724, %v724
    %v727 = vunpack.c.l.s4 1966171168
    %v728 = vunpack.c.0.s8 %v727
    %v729 = vlaneseq
    %v730 = vshrl.u32 %v729, 7
    %v731 = vsub.s32 %v728, %v730
    %v732 = vrot.slane %v724, %v731
    %v734 = vunpack.c.l.s4 1966171168
    %v735 = vunpack.c.0.s8 %v734
    %v736 = vlaneseq
    %v737 = vshrl.u32 %v736, 7
    %v738 = vsub.s32 %v735, %v737
    %v739 = vrot.slane %v725, %v738
    %v741 = vunpack.c.l.s4 1966171168
    %v742 = vunpack.c.0.s8 %v741
    %v743 = vlaneseq
    %v744 = vshrl.u32 %v743, 7
    %v745 = vsub.s32 %v742, %v744
    %v746 = vrot.slane %v318, %v745
    %v747 = vcombine.high %v746, %v746
    %v749 = vunpack.c.l.s4 1966171168
    %v750 = vunpack.c.0.s8 %v749
    %v751 = vlaneseq
    %v752 = vshrl.u32 %v751, 7
    %v753 = vsub.s32 %v750, %v752
    %v754 = vrot.slane %v746, %v753
    %v756 = vunpack.c.l.s4 1966171168
    %v757 = vunpack.c.0.s8 %v756
    %v758 = vlaneseq
    %v759 = vshrl.u32 %v758, 7
    %v760 = vsub.s32 %v757, %v759
    %v761 = vrot.slane %v747, %v760
    %v763 = vunpack.c.l.s4 1966171168
    %v764 = vunpack.c.0.s8 %v763
    %v765 = vlaneseq
    %v766 = vshrl.u32 %v765, 7
    %v767 = vsub.s32 %v764, %v766
    %v768 = vrot.slane %v319, %v767
    %v769 = vcombine.high %v768, %v768
    %v771 = vunpack.c.l.s4 1966171168
    %v772 = vunpack.c.0.s8 %v771
    %v773 = vlaneseq
    %v774 = vshrl.u32 %v773, 7
    %v775 = vsub.s32 %v772, %v774
    %v776 = vrot.slane %v768, %v775
    %v778 = vunpack.c.l.s4 1966171168
    %v779 = vunpack.c.0.s8 %v778
    %v780 = vlaneseq
    %v781 = vshrl.u32 %v780, 7
    %v782 = vsub.s32 %v779, %v781
    %v783 = vrot.slane %v769, %v782
    %v784 = vlaneseq
    %v785 = vshrl.u32 %v784, 7
    %v786 = vsub.s32 0, %v785
    %v787 = vrot.slane %v622, %v786
    %v788 = vlaneseq
    %v789 = vshrl.u32 %v788, 7
    %v790 = vsub.s32 0, %v789
    %v791 = vrot.slane %v629, %v790
    %v792 = vlaneseq
    %v793 = vshrl.u32 %v792, 7
    %v794 = vsub.s32 0, %v793
    %v795 = vrot.slane %v644, %v794
    %v796 = vlaneseq
    %v797 = vshrl.u32 %v796, 7
    %v798 = vsub.s32 0, %v797
    %v799 = vrot.slane %v651, %v798
    %v800 = vlaneseq
    %v801 = vshrl.u32 %v800, 7
    %v802 = vsub.s32 0, %v801
    %v803 = vrot.slane %v666, %v802
    %v804 = vlaneseq
    %v805 = vshrl.u32 %v804, 7
    %v806 = vsub.s32 0, %v805
    %v807 = vrot.slane %v673, %v806
    %v808 = vlaneseq
    %v809 = vshrl.u32 %v808, 7
    %v810 = vsub.s32 0, %v809
    %v811 = vrot.slane %v688, %v810
    %v812 = vlaneseq
    %v813 = vshrl.u32 %v812, 7
    %v814 = vsub.s32 0, %v813
    %v815 = vrot.slane %v695, %v814
    %v816 = vlaneseq
    %v817 = vshrl.u32 %v816, 7
    %v818 = vsub.s32 0, %v817
    %v819 = vrot.slane %v710, %v818
    %v820 = vlaneseq
    %v821 = vshrl.u32 %v820, 7
    %v822 = vsub.s32 0, %v821
    %v823 = vrot.slane %v717, %v822
    %v824 = vlaneseq
    %v825 = vshrl.u32 %v824, 7
    %v826 = vsub.s32 0, %v825
    %v827 = vrot.slane %v732, %v826
    %v828 = vlaneseq
    %v829 = vshrl.u32 %v828, 7
    %v830 = vsub.s32 0, %v829
    %v831 = vrot.slane %v739, %v830
    %v832 = vlaneseq
    %v833 = vshrl.u32 %v832, 7
    %v834 = vsub.s32 0, %v833
    %v835 = vrot.slane %v754, %v834
    %v836 = vlaneseq
    %v837 = vshrl.u32 %v836, 7
    %v838 = vsub.s32 0, %v837
    %v839 = vrot.slane %v761, %v838
    %v840 = vlaneseq
    %v841 = vshrl.u32 %v840, 7
    %v842 = vsub.s32 0, %v841
    %v843 = vrot.slane %v776, %v842
    %v844 = vlaneseq
    %v845 = vshrl.u32 %v844, 7
    %v846 = vsub.s32 0, %v845
    %v847 = vrot.slane %v783, %v846
    %v864 = vmul.f32 %v787, %v584
    %v865 = vmul.f32 %v787, %v585
    %v866 = vmul.f32 %v791, %v592
    %v867 = vmul.f32 %v791, %v593
    %v868 = vmul.f32 %v795, %v584
    %v869 = vmul.f32 %v795, %v585
    %v870 = vmul.f32 %v799, %v592
    %v871 = vmul.f32 %v799, %v593
    %v872 = vmul.f32 %v803, %v584
    %v873 = vmul.f32 %v803, %v585
    %v874 = vmul.f32 %v807, %v592
    %v875 = vmul.f32 %v807, %v593
    %v876 = vmul.f32 %v811, %v584
    %v877 = vmul.f32 %v811, %v585
    %v878 = vmul.f32 %v815, %v592
    %v879 = vmul.f32 %v815, %v593
    %v880 = vmul.f32 %v819, %v584
    %v881 = vmul.f32 %v819, %v585
    %v882 = vmul.f32 %v823, %v592
    %v883 = vmul.f32 %v823, %v593
    %v884 = vmul.f32 %v827, %v584
    %v885 = vmul.f32 %v827, %v585
    %v886 = vmul.f32 %v831, %v592
    %v887 = vmul.f32 %v831, %v593
    %v888 = vmul.f32 %v835, %v584
    %v889 = vmul.f32 %v835, %v585
    %v890 = vmul.f32 %v839, %v592
    %v891 = vmul.f32 %v839, %v593
    %v892 = vmul.f32 %v843, %v584
    %v893 = vmul.f32 %v843, %v585
    %v894 = vmul.f32 %v847, %v592
    %v895 = vmul.f32 %v847, %v593
    %vm896 = vcmask 130048
    %v897 = vsel %vm896, %v864, 0.0
    %898 = vadd.xlane.f32.xlu0 %v897
    %v899 = vpop.xlane.xlu0 %898
    %v900 = vsel %vm896, %v865, 0.0
    %901 = vadd.xlane.f32.xlu0 %v900
    %v902 = vpop.xlane.xlu0 %901
    %v903 = vsel %vm896, %v866, 0.0
    %904 = vadd.xlane.f32.xlu0 %v903
    %v905 = vpop.xlane.xlu0 %904
    %v906 = vsel %vm896, %v867, 0.0
    %907 = vadd.xlane.f32.xlu0 %v906
    %v908 = vpop.xlane.xlu0 %907
    %v909 = vsel %vm896, %v868, 0.0
    %910 = vadd.xlane.f32.xlu0 %v909
    %v911 = vpop.xlane.xlu0 %910
    %v912 = vsel %vm896, %v869, 0.0
    %913 = vadd.xlane.f32.xlu0 %v912
    %v914 = vpop.xlane.xlu0 %913
    %v915 = vsel %vm896, %v870, 0.0
    %916 = vadd.xlane.f32.xlu0 %v915
    %v917 = vpop.xlane.xlu0 %916
    %v918 = vsel %vm896, %v871, 0.0
    %919 = vadd.xlane.f32.xlu0 %v918
    %v920 = vpop.xlane.xlu0 %919
    %v921 = vsel %vm896, %v872, 0.0
    %922 = vadd.xlane.f32.xlu0 %v921
    %v923 = vpop.xlane.xlu0 %922
    %v924 = vsel %vm896, %v873, 0.0
    %925 = vadd.xlane.f32.xlu0 %v924
    %v926 = vpop.xlane.xlu0 %925
    %v927 = vsel %vm896, %v874, 0.0
    %928 = vadd.xlane.f32.xlu0 %v927
    %v929 = vpop.xlane.xlu0 %928
    %v930 = vsel %vm896, %v875, 0.0
    %931 = vadd.xlane.f32.xlu0 %v930
    %v932 = vpop.xlane.xlu0 %931
    %v933 = vsel %vm896, %v876, 0.0
    %934 = vadd.xlane.f32.xlu0 %v933
    %v935 = vpop.xlane.xlu0 %934
    %v936 = vsel %vm896, %v877, 0.0
    %937 = vadd.xlane.f32.xlu0 %v936
    %v938 = vpop.xlane.xlu0 %937
    %v939 = vsel %vm896, %v878, 0.0
    %940 = vadd.xlane.f32.xlu0 %v939
    %v941 = vpop.xlane.xlu0 %940
    %v942 = vsel %vm896, %v879, 0.0
    %943 = vadd.xlane.f32.xlu0 %v942
    %v944 = vpop.xlane.xlu0 %943
    %v945 = vsel %vm896, %v880, 0.0
    %946 = vadd.xlane.f32.xlu0 %v945
    %v947 = vpop.xlane.xlu0 %946
    %v948 = vsel %vm896, %v881, 0.0
    %949 = vadd.xlane.f32.xlu0 %v948
    %v950 = vpop.xlane.xlu0 %949
    %v951 = vsel %vm896, %v882, 0.0
    %952 = vadd.xlane.f32.xlu0 %v951
    %v953 = vpop.xlane.xlu0 %952
    %v954 = vsel %vm896, %v883, 0.0
    %955 = vadd.xlane.f32.xlu0 %v954
    %v956 = vpop.xlane.xlu0 %955
    %v957 = vsel %vm896, %v884, 0.0
    %958 = vadd.xlane.f32.xlu0 %v957
    %v959 = vpop.xlane.xlu0 %958
    %v960 = vsel %vm896, %v885, 0.0
    %961 = vadd.xlane.f32.xlu0 %v960
    %v962 = vpop.xlane.xlu0 %961
    %v963 = vsel %vm896, %v886, 0.0
    %964 = vadd.xlane.f32.xlu0 %v963
    %v965 = vpop.xlane.xlu0 %964
    %v966 = vsel %vm896, %v887, 0.0
    %967 = vadd.xlane.f32.xlu0 %v966
    %v968 = vpop.xlane.xlu0 %967
    %v969 = vsel %vm896, %v888, 0.0
    %970 = vadd.xlane.f32.xlu0 %v969
    %v971 = vpop.xlane.xlu0 %970
    %v972 = vsel %vm896, %v889, 0.0
    %973 = vadd.xlane.f32.xlu0 %v972
    %v974 = vpop.xlane.xlu0 %973
    %v975 = vsel %vm896, %v890, 0.0
    %976 = vadd.xlane.f32.xlu0 %v975
    %v977 = vpop.xlane.xlu0 %976
    %v978 = vsel %vm896, %v891, 0.0
    %979 = vadd.xlane.f32.xlu0 %v978
    %v980 = vpop.xlane.xlu0 %979
    %v981 = vsel %vm896, %v892, 0.0
    %982 = vadd.xlane.f32.xlu0 %v981
    %v983 = vpop.xlane.xlu0 %982
    %v984 = vsel %vm896, %v893, 0.0
    %985 = vadd.xlane.f32.xlu0 %v984
    %v986 = vpop.xlane.xlu0 %985
    %v987 = vsel %vm896, %v894, 0.0
    %988 = vadd.xlane.f32.xlu0 %v987
    %v989 = vpop.xlane.xlu0 %988
    %v990 = vsel %vm896, %v895, 0.0
    %991 = vadd.xlane.f32.xlu0 %v990
    %v992 = vpop.xlane.xlu0 %991
    %v1025 = vlaneseq
    %v1026 = vshrl.u32 %v1025, 7
    %v1027 = vsub.s32 %v55, %v1026
    %v1028 = vrot.slane %v899, %v1027
    %v1029 = vadd.s32 %v55, 4294967288
    %v1030 = vlaneseq
    %v1031 = vshrl.u32 %v1030, 7
    %v1032 = vsub.s32 %v1029, %v1031
    %v1033 = vrot.slane %v902, %v1032
    %vm1034 = vcmask 130112
    %v1035 = vsel %vm1034, %v1033, %v1028
    %v1036 = vlaneseq
    %v1037 = vshrl.u32 %v1036, 7
    %v1038 = vsub.s32 %v55, %v1037
    %v1039 = vrot.slane %v905, %v1038
    %v1040 = vlaneseq
    %v1041 = vshrl.u32 %v1040, 7
    %v1042 = vsub.s32 %v1029, %v1041
    %v1043 = vrot.slane %v908, %v1042
    %v1044 = vsel %vm1034, %v1043, %v1039
    %v1045 = vlaneseq
    %v1046 = vshrl.u32 %v1045, 7
    %v1047 = vsub.s32 %v55, %v1046
    %v1048 = vrot.slane %v911, %v1047
    %v1049 = vlaneseq
    %v1050 = vshrl.u32 %v1049, 7
    %v1051 = vsub.s32 %v1029, %v1050
    %v1052 = vrot.slane %v914, %v1051
    %v1053 = vsel %vm1034, %v1052, %v1048
    %v1054 = vlaneseq
    %v1055 = vshrl.u32 %v1054, 7
    %v1056 = vsub.s32 %v55, %v1055
    %v1057 = vrot.slane %v917, %v1056
    %v1058 = vlaneseq
    %v1059 = vshrl.u32 %v1058, 7
    %v1060 = vsub.s32 %v1029, %v1059
    %v1061 = vrot.slane %v920, %v1060
    %v1062 = vsel %vm1034, %v1061, %v1057
    %v1063 = vlaneseq
    %v1064 = vshrl.u32 %v1063, 7
    %v1065 = vsub.s32 %v55, %v1064
    %v1066 = vrot.slane %v923, %v1065
    %v1067 = vlaneseq
    %v1068 = vshrl.u32 %v1067, 7
    %v1069 = vsub.s32 %v1029, %v1068
    %v1070 = vrot.slane %v926, %v1069
    %v1071 = vsel %vm1034, %v1070, %v1066
    %v1072 = vlaneseq
    %v1073 = vshrl.u32 %v1072, 7
    %v1074 = vsub.s32 %v55, %v1073
    %v1075 = vrot.slane %v929, %v1074
    %v1076 = vlaneseq
    %v1077 = vshrl.u32 %v1076, 7
    %v1078 = vsub.s32 %v1029, %v1077
    %v1079 = vrot.slane %v932, %v1078
    %v1080 = vsel %vm1034, %v1079, %v1075
    %v1081 = vlaneseq
    %v1082 = vshrl.u32 %v1081, 7
    %v1083 = vsub.s32 %v55, %v1082
    %v1084 = vrot.slane %v935, %v1083
    %v1085 = vlaneseq
    %v1086 = vshrl.u32 %v1085, 7
    %v1087 = vsub.s32 %v1029, %v1086
    %v1088 = vrot.slane %v938, %v1087
    %v1089 = vsel %vm1034, %v1088, %v1084
    %v1090 = vlaneseq
    %v1091 = vshrl.u32 %v1090, 7
    %v1092 = vsub.s32 %v55, %v1091
    %v1093 = vrot.slane %v941, %v1092
    %v1094 = vlaneseq
    %v1095 = vshrl.u32 %v1094, 7
    %v1096 = vsub.s32 %v1029, %v1095
    %v1097 = vrot.slane %v944, %v1096
    %v1098 = vsel %vm1034, %v1097, %v1093
    %v1099 = vlaneseq
    %v1100 = vshrl.u32 %v1099, 7
    %v1101 = vsub.s32 %v55, %v1100
    %v1102 = vrot.slane %v947, %v1101
    %v1103 = vlaneseq
    %v1104 = vshrl.u32 %v1103, 7
    %v1105 = vsub.s32 %v1029, %v1104
    %v1106 = vrot.slane %v950, %v1105
    %v1107 = vsel %vm1034, %v1106, %v1102
    %v1108 = vlaneseq
    %v1109 = vshrl.u32 %v1108, 7
    %v1110 = vsub.s32 %v55, %v1109
    %v1111 = vrot.slane %v953, %v1110
    %v1112 = vlaneseq
    %v1113 = vshrl.u32 %v1112, 7
    %v1114 = vsub.s32 %v1029, %v1113
    %v1115 = vrot.slane %v956, %v1114
    %v1116 = vsel %vm1034, %v1115, %v1111
    %v1117 = vlaneseq
    %v1118 = vshrl.u32 %v1117, 7
    %v1119 = vsub.s32 %v55, %v1118
    %v1120 = vrot.slane %v959, %v1119
    %v1121 = vlaneseq
    %v1122 = vshrl.u32 %v1121, 7
    %v1123 = vsub.s32 %v1029, %v1122
    %v1124 = vrot.slane %v962, %v1123
    %v1125 = vsel %vm1034, %v1124, %v1120
    %v1126 = vlaneseq
    %v1127 = vshrl.u32 %v1126, 7
    %v1128 = vsub.s32 %v55, %v1127
    %v1129 = vrot.slane %v965, %v1128
    %v1130 = vlaneseq
    %v1131 = vshrl.u32 %v1130, 7
    %v1132 = vsub.s32 %v1029, %v1131
    %v1133 = vrot.slane %v968, %v1132
    %v1134 = vsel %vm1034, %v1133, %v1129
    %v1135 = vlaneseq
    %v1136 = vshrl.u32 %v1135, 7
    %v1137 = vsub.s32 %v55, %v1136
    %v1138 = vrot.slane %v971, %v1137
    %v1139 = vlaneseq
    %v1140 = vshrl.u32 %v1139, 7
    %v1141 = vsub.s32 %v1029, %v1140
    %v1142 = vrot.slane %v974, %v1141
    %v1143 = vsel %vm1034, %v1142, %v1138
    %v1144 = vlaneseq
    %v1145 = vshrl.u32 %v1144, 7
    %v1146 = vsub.s32 %v55, %v1145
    %v1147 = vrot.slane %v977, %v1146
    %v1148 = vlaneseq
    %v1149 = vshrl.u32 %v1148, 7
    %v1150 = vsub.s32 %v1029, %v1149
    %v1151 = vrot.slane %v980, %v1150
    %v1152 = vsel %vm1034, %v1151, %v1147
    %v1153 = vlaneseq
    %v1154 = vshrl.u32 %v1153, 7
    %v1155 = vsub.s32 %v55, %v1154
    %v1156 = vrot.slane %v983, %v1155
    %v1157 = vlaneseq
    %v1158 = vshrl.u32 %v1157, 7
    %v1159 = vsub.s32 %v1029, %v1158
    %v1160 = vrot.slane %v986, %v1159
    %v1161 = vsel %vm1034, %v1160, %v1156
    %v1162 = vlaneseq
    %v1163 = vshrl.u32 %v1162, 7
    %v1164 = vsub.s32 %v55, %v1163
    %v1165 = vrot.slane %v989, %v1164
    %v1166 = vlaneseq
    %v1167 = vshrl.u32 %v1166, 7
    %v1168 = vsub.s32 %v1029, %v1167
    %v1169 = vrot.slane %v992, %v1168
    %v1170 = vsel %vm1034, %v1169, %v1165
    %vm1171 = vcmask 1041409
    %v1172 = vsel %vm1171, %v1044, %v1035
    %v1173 = vsel %vm1171, %v1062, %v1053
    %v1174 = vsel %vm1171, %v1080, %v1071
    %v1175 = vsel %vm1171, %v1098, %v1089
    %v1176 = vsel %vm1171, %v1116, %v1107
    %v1177 = vsel %vm1171, %v1134, %v1125
    %v1178 = vsel %vm1171, %v1152, %v1143
    %v1179 = vsel %vm1171, %v1170, %v1161
    %v1188 = vmul.f32 %v576, %v1172
    %v1189 = vmul.f32 %v577, %v1173
    %v1190 = vmul.f32 %v578, %v1174
    %v1191 = vmul.f32 %v579, %v1175
    %v1192 = vmul.f32 %v580, %v1176
    %v1193 = vmul.f32 %v581, %v1177
    %v1194 = vmul.f32 %v582, %v1178
    %v1195 = vmul.f32 %v583, %v1179
    %vm1196 = vcmask 123904
    %v1197 = vsel %vm1196, %v1188, 0.0
    %1198 = vadd.xlane.f32.xlu0 %v1197
    %v1199 = vpop.xlane.xlu0 %1198
    %v1200 = vsel %vm1196, %v1189, 0.0
    %1201 = vadd.xlane.f32.xlu0 %v1200
    %v1202 = vpop.xlane.xlu0 %1201
    %v1203 = vsel %vm1196, %v1190, 0.0
    %1204 = vadd.xlane.f32.xlu0 %v1203
    %v1205 = vpop.xlane.xlu0 %1204
    %v1206 = vsel %vm1196, %v1191, 0.0
    %1207 = vadd.xlane.f32.xlu0 %v1206
    %v1208 = vpop.xlane.xlu0 %1207
    %v1209 = vsel %vm1196, %v1192, 0.0
    %1210 = vadd.xlane.f32.xlu0 %v1209
    %v1211 = vpop.xlane.xlu0 %1210
    %v1212 = vsel %vm1196, %v1193, 0.0
    %1213 = vadd.xlane.f32.xlu0 %v1212
    %v1214 = vpop.xlane.xlu0 %1213
    %v1215 = vsel %vm1196, %v1194, 0.0
    %1216 = vadd.xlane.f32.xlu0 %v1215
    %v1217 = vpop.xlane.xlu0 %1216
    %v1218 = vsel %vm1196, %v1195, 0.0
    %1219 = vadd.xlane.f32.xlu0 %v1218
    %v1220 = vpop.xlane.xlu0 %1219
    %v1221 = vmul.f32 %v787, %v586
    %v1222 = vmul.f32 %v787, %v587
    %v1223 = vmul.f32 %v791, %v594
    %v1224 = vmul.f32 %v791, %v595
    %v1225 = vmul.f32 %v795, %v586
    %v1226 = vmul.f32 %v795, %v587
    %v1227 = vmul.f32 %v799, %v594
    %v1228 = vmul.f32 %v799, %v595
    %v1229 = vmul.f32 %v803, %v586
    %v1230 = vmul.f32 %v803, %v587
    %v1231 = vmul.f32 %v807, %v594
    %v1232 = vmul.f32 %v807, %v595
    %v1233 = vmul.f32 %v811, %v586
    %v1234 = vmul.f32 %v811, %v587
    %v1235 = vmul.f32 %v815, %v594
    %v1236 = vmul.f32 %v815, %v595
    %v1237 = vmul.f32 %v819, %v586
    %v1238 = vmul.f32 %v819, %v587
    %v1239 = vmul.f32 %v823, %v594
    %v1240 = vmul.f32 %v823, %v595
    %v1241 = vmul.f32 %v827, %v586
    %v1242 = vmul.f32 %v827, %v587
    %v1243 = vmul.f32 %v831, %v594
    %v1244 = vmul.f32 %v831, %v595
    %v1245 = vmul.f32 %v835, %v586
    %v1246 = vmul.f32 %v835, %v587
    %v1247 = vmul.f32 %v839, %v594
    %v1248 = vmul.f32 %v839, %v595
    %v1249 = vmul.f32 %v843, %v586
    %v1250 = vmul.f32 %v843, %v587
    %v1251 = vmul.f32 %v847, %v594
    %v1252 = vmul.f32 %v847, %v595
    %v1253 = vsel %vm896, %v1221, 0.0
    %1254 = vadd.xlane.f32.xlu0 %v1253
    %v1255 = vpop.xlane.xlu0 %1254
    %v1256 = vsel %vm896, %v1222, 0.0
    %1257 = vadd.xlane.f32.xlu0 %v1256
    %v1258 = vpop.xlane.xlu0 %1257
    %v1259 = vsel %vm896, %v1223, 0.0
    %1260 = vadd.xlane.f32.xlu0 %v1259
    %v1261 = vpop.xlane.xlu0 %1260
    %v1262 = vsel %vm896, %v1224, 0.0
    %1263 = vadd.xlane.f32.xlu0 %v1262
    %v1264 = vpop.xlane.xlu0 %1263
    %v1265 = vsel %vm896, %v1225, 0.0
    %1266 = vadd.xlane.f32.xlu0 %v1265
    %v1267 = vpop.xlane.xlu0 %1266
    %v1268 = vsel %vm896, %v1226, 0.0
    %1269 = vadd.xlane.f32.xlu0 %v1268
    %v1270 = vpop.xlane.xlu0 %1269
    %v1271 = vsel %vm896, %v1227, 0.0
    %1272 = vadd.xlane.f32.xlu0 %v1271
    %v1273 = vpop.xlane.xlu0 %1272
    %v1274 = vsel %vm896, %v1228, 0.0
    %1275 = vadd.xlane.f32.xlu0 %v1274
    %v1276 = vpop.xlane.xlu0 %1275
    %v1277 = vsel %vm896, %v1229, 0.0
    %1278 = vadd.xlane.f32.xlu0 %v1277
    %v1279 = vpop.xlane.xlu0 %1278
    %v1280 = vsel %vm896, %v1230, 0.0
    %1281 = vadd.xlane.f32.xlu0 %v1280
    %v1282 = vpop.xlane.xlu0 %1281
    %v1283 = vsel %vm896, %v1231, 0.0
    %1284 = vadd.xlane.f32.xlu0 %v1283
    %v1285 = vpop.xlane.xlu0 %1284
    %v1286 = vsel %vm896, %v1232, 0.0
    %1287 = vadd.xlane.f32.xlu0 %v1286
    %v1288 = vpop.xlane.xlu0 %1287
    %v1289 = vsel %vm896, %v1233, 0.0
    %1290 = vadd.xlane.f32.xlu0 %v1289
    %v1291 = vpop.xlane.xlu0 %1290
    %v1292 = vsel %vm896, %v1234, 0.0
    %1293 = vadd.xlane.f32.xlu0 %v1292
    %v1294 = vpop.xlane.xlu0 %1293
    %v1295 = vsel %vm896, %v1235, 0.0
    %1296 = vadd.xlane.f32.xlu0 %v1295
    %v1297 = vpop.xlane.xlu0 %1296
    %v1298 = vsel %vm896, %v1236, 0.0
    %1299 = vadd.xlane.f32.xlu0 %v1298
    %v1300 = vpop.xlane.xlu0 %1299
    %v1301 = vsel %vm896, %v1237, 0.0
    %1302 = vadd.xlane.f32.xlu0 %v1301
    %v1303 = vpop.xlane.xlu0 %1302
    %v1304 = vsel %vm896, %v1238, 0.0
    %1305 = vadd.xlane.f32.xlu0 %v1304
    %v1306 = vpop.xlane.xlu0 %1305
    %v1307 = vsel %vm896, %v1239, 0.0
    %1308 = vadd.xlane.f32.xlu0 %v1307
    %v1309 = vpop.xlane.xlu0 %1308
    %v1310 = vsel %vm896, %v1240, 0.0
    %1311 = vadd.xlane.f32.xlu0 %v1310
    %v1312 = vpop.xlane.xlu0 %1311
    %v1313 = vsel %vm896, %v1241, 0.0
    %1314 = vadd.xlane.f32.xlu0 %v1313
    %v1315 = vpop.xlane.xlu0 %1314
    %v1316 = vsel %vm896, %v1242, 0.0
    %1317 = vadd.xlane.f32.xlu0 %v1316
    %v1318 = vpop.xlane.xlu0 %1317
    %v1319 = vsel %vm896, %v1243, 0.0
    %1320 = vadd.xlane.f32.xlu0 %v1319
    %v1321 = vpop.xlane.xlu0 %1320
    %v1322 = vsel %vm896, %v1244, 0.0
    %1323 = vadd.xlane.f32.xlu0 %v1322
    %v1324 = vpop.xlane.xlu0 %1323
    %v1325 = vsel %vm896, %v1245, 0.0
    %1326 = vadd.xlane.f32.xlu0 %v1325
    %v1327 = vpop.xlane.xlu0 %1326
    %v1328 = vsel %vm896, %v1246, 0.0
    %1329 = vadd.xlane.f32.xlu0 %v1328
    %v1330 = vpop.xlane.xlu0 %1329
    %v1331 = vsel %vm896, %v1247, 0.0
    %1332 = vadd.xlane.f32.xlu0 %v1331
    %v1333 = vpop.xlane.xlu0 %1332
    %v1334 = vsel %vm896, %v1248, 0.0
    %1335 = vadd.xlane.f32.xlu0 %v1334
    %v1336 = vpop.xlane.xlu0 %1335
    %v1337 = vsel %vm896, %v1249, 0.0
    %1338 = vadd.xlane.f32.xlu0 %v1337
    %v1339 = vpop.xlane.xlu0 %1338
    %v1340 = vsel %vm896, %v1250, 0.0
    %1341 = vadd.xlane.f32.xlu0 %v1340
    %v1342 = vpop.xlane.xlu0 %1341
    %v1343 = vsel %vm896, %v1251, 0.0
    %1344 = vadd.xlane.f32.xlu0 %v1343
    %v1345 = vpop.xlane.xlu0 %1344
    %v1346 = vsel %vm896, %v1252, 0.0
    %1347 = vadd.xlane.f32.xlu0 %v1346
    %v1348 = vpop.xlane.xlu0 %1347
    %v1381 = vlaneseq
    %v1382 = vshrl.u32 %v1381, 7
    %v1383 = vsub.s32 %v55, %v1382
    %v1384 = vrot.slane %v1255, %v1383
    %v1385 = vlaneseq
    %v1386 = vshrl.u32 %v1385, 7
    %v1387 = vsub.s32 %v1029, %v1386
    %v1388 = vrot.slane %v1258, %v1387
    %v1389 = vsel %vm1034, %v1388, %v1384
    %v1390 = vlaneseq
    %v1391 = vshrl.u32 %v1390, 7
    %v1392 = vsub.s32 %v55, %v1391
    %v1393 = vrot.slane %v1261, %v1392
    %v1394 = vlaneseq
    %v1395 = vshrl.u32 %v1394, 7
    %v1396 = vsub.s32 %v1029, %v1395
    %v1397 = vrot.slane %v1264, %v1396
    %v1398 = vsel %vm1034, %v1397, %v1393
    %v1399 = vlaneseq
    %v1400 = vshrl.u32 %v1399, 7
    %v1401 = vsub.s32 %v55, %v1400
    %v1402 = vrot.slane %v1267, %v1401
    %v1403 = vlaneseq
    %v1404 = vshrl.u32 %v1403, 7
    %v1405 = vsub.s32 %v1029, %v1404
    %v1406 = vrot.slane %v1270, %v1405
    %v1407 = vsel %vm1034, %v1406, %v1402
    %v1408 = vlaneseq
    %v1409 = vshrl.u32 %v1408, 7
    %v1410 = vsub.s32 %v55, %v1409
    %v1411 = vrot.slane %v1273, %v1410
    %v1412 = vlaneseq
    %v1413 = vshrl.u32 %v1412, 7
    %v1414 = vsub.s32 %v1029, %v1413
    %v1415 = vrot.slane %v1276, %v1414
    %v1416 = vsel %vm1034, %v1415, %v1411
    %v1417 = vlaneseq
    %v1418 = vshrl.u32 %v1417, 7
    %v1419 = vsub.s32 %v55, %v1418
    %v1420 = vrot.slane %v1279, %v1419
    %v1421 = vlaneseq
    %v1422 = vshrl.u32 %v1421, 7
    %v1423 = vsub.s32 %v1029, %v1422
    %v1424 = vrot.slane %v1282, %v1423
    %v1425 = vsel %vm1034, %v1424, %v1420
    %v1426 = vlaneseq
    %v1427 = vshrl.u32 %v1426, 7
    %v1428 = vsub.s32 %v55, %v1427
    %v1429 = vrot.slane %v1285, %v1428
    %v1430 = vlaneseq
    %v1431 = vshrl.u32 %v1430, 7
    %v1432 = vsub.s32 %v1029, %v1431
    %v1433 = vrot.slane %v1288, %v1432
    %v1434 = vsel %vm1034, %v1433, %v1429
    %v1435 = vlaneseq
    %v1436 = vshrl.u32 %v1435, 7
    %v1437 = vsub.s32 %v55, %v1436
    %v1438 = vrot.slane %v1291, %v1437
    %v1439 = vlaneseq
    %v1440 = vshrl.u32 %v1439, 7
    %v1441 = vsub.s32 %v1029, %v1440
    %v1442 = vrot.slane %v1294, %v1441
    %v1443 = vsel %vm1034, %v1442, %v1438
    %v1444 = vlaneseq
    %v1445 = vshrl.u32 %v1444, 7
    %v1446 = vsub.s32 %v55, %v1445
    %v1447 = vrot.slane %v1297, %v1446
    %v1448 = vlaneseq
    %v1449 = vshrl.u32 %v1448, 7
    %v1450 = vsub.s32 %v1029, %v1449
    %v1451 = vrot.slane %v1300, %v1450
    %v1452 = vsel %vm1034, %v1451, %v1447
    %v1453 = vlaneseq
    %v1454 = vshrl.u32 %v1453, 7
    %v1455 = vsub.s32 %v55, %v1454
    %v1456 = vrot.slane %v1303, %v1455
    %v1457 = vlaneseq
    %v1458 = vshrl.u32 %v1457, 7
    %v1459 = vsub.s32 %v1029, %v1458
    %v1460 = vrot.slane %v1306, %v1459
    %v1461 = vsel %vm1034, %v1460, %v1456
    %v1462 = vlaneseq
    %v1463 = vshrl.u32 %v1462, 7
    %v1464 = vsub.s32 %v55, %v1463
    %v1465 = vrot.slane %v1309, %v1464
    %v1466 = vlaneseq
    %v1467 = vshrl.u32 %v1466, 7
    %v1468 = vsub.s32 %v1029, %v1467
    %v1469 = vrot.slane %v1312, %v1468
    %v1470 = vsel %vm1034, %v1469, %v1465
    %v1471 = vlaneseq
    %v1472 = vshrl.u32 %v1471, 7
    %v1473 = vsub.s32 %v55, %v1472
    %v1474 = vrot.slane %v1315, %v1473
    %v1475 = vlaneseq
    %v1476 = vshrl.u32 %v1475, 7
    %v1477 = vsub.s32 %v1029, %v1476
    %v1478 = vrot.slane %v1318, %v1477
    %v1479 = vsel %vm1034, %v1478, %v1474
    %v1480 = vlaneseq
    %v1481 = vshrl.u32 %v1480, 7
    %v1482 = vsub.s32 %v55, %v1481
    %v1483 = vrot.slane %v1321, %v1482
    %v1484 = vlaneseq
    %v1485 = vshrl.u32 %v1484, 7
    %v1486 = vsub.s32 %v1029, %v1485
    %v1487 = vrot.slane %v1324, %v1486
    %v1488 = vsel %vm1034, %v1487, %v1483
    %v1489 = vlaneseq
    %v1490 = vshrl.u32 %v1489, 7
    %v1491 = vsub.s32 %v55, %v1490
    %v1492 = vrot.slane %v1327, %v1491
    %v1493 = vlaneseq
    %v1494 = vshrl.u32 %v1493, 7
    %v1495 = vsub.s32 %v1029, %v1494
    %v1496 = vrot.slane %v1330, %v1495
    %v1497 = vsel %vm1034, %v1496, %v1492
    %v1498 = vlaneseq
    %v1499 = vshrl.u32 %v1498, 7
    %v1500 = vsub.s32 %v55, %v1499
    %v1501 = vrot.slane %v1333, %v1500
    %v1502 = vlaneseq
    %v1503 = vshrl.u32 %v1502, 7
    %v1504 = vsub.s32 %v1029, %v1503
    %v1505 = vrot.slane %v1336, %v1504
    %v1506 = vsel %vm1034, %v1505, %v1501
    %v1507 = vlaneseq
    %v1508 = vshrl.u32 %v1507, 7
    %v1509 = vsub.s32 %v55, %v1508
    %v1510 = vrot.slane %v1339, %v1509
    %v1511 = vlaneseq
    %v1512 = vshrl.u32 %v1511, 7
    %v1513 = vsub.s32 %v1029, %v1512
    %v1514 = vrot.slane %v1342, %v1513
    %v1515 = vsel %vm1034, %v1514, %v1510
    %v1516 = vlaneseq
    %v1517 = vshrl.u32 %v1516, 7
    %v1518 = vsub.s32 %v55, %v1517
    %v1519 = vrot.slane %v1345, %v1518
    %v1520 = vlaneseq
    %v1521 = vshrl.u32 %v1520, 7
    %v1522 = vsub.s32 %v1029, %v1521
    %v1523 = vrot.slane %v1348, %v1522
    %v1524 = vsel %vm1034, %v1523, %v1519
    %v1525 = vsel %vm1171, %v1398, %v1389
    %v1526 = vsel %vm1171, %v1416, %v1407
    %v1527 = vsel %vm1171, %v1434, %v1425
    %v1528 = vsel %vm1171, %v1452, %v1443
    %v1529 = vsel %vm1171, %v1470, %v1461
    %v1530 = vsel %vm1171, %v1488, %v1479
    %v1531 = vsel %vm1171, %v1506, %v1497
    %v1532 = vsel %vm1171, %v1524, %v1515
    %v1541 = vmul.f32 %v576, %v1525
    %v1542 = vmul.f32 %v577, %v1526
    %v1543 = vmul.f32 %v578, %v1527
    %v1544 = vmul.f32 %v579, %v1528
    %v1545 = vmul.f32 %v580, %v1529
    %v1546 = vmul.f32 %v581, %v1530
    %v1547 = vmul.f32 %v582, %v1531
    %v1548 = vmul.f32 %v583, %v1532
    %v1549 = vsel %vm1196, %v1541, 0.0
    %1550 = vadd.xlane.f32.xlu0 %v1549
    %v1551 = vpop.xlane.xlu0 %1550
    %v1552 = vsel %vm1196, %v1542, 0.0
    %1553 = vadd.xlane.f32.xlu0 %v1552
    %v1554 = vpop.xlane.xlu0 %1553
    %v1555 = vsel %vm1196, %v1543, 0.0
    %1556 = vadd.xlane.f32.xlu0 %v1555
    %v1557 = vpop.xlane.xlu0 %1556
    %v1558 = vsel %vm1196, %v1544, 0.0
    %1559 = vadd.xlane.f32.xlu0 %v1558
    %v1560 = vpop.xlane.xlu0 %1559
    %v1561 = vsel %vm1196, %v1545, 0.0
    %1562 = vadd.xlane.f32.xlu0 %v1561
    %v1563 = vpop.xlane.xlu0 %1562
    %v1564 = vsel %vm1196, %v1546, 0.0
    %1565 = vadd.xlane.f32.xlu0 %v1564
    %v1566 = vpop.xlane.xlu0 %1565
    %v1567 = vsel %vm1196, %v1547, 0.0
    %1568 = vadd.xlane.f32.xlu0 %v1567
    %v1569 = vpop.xlane.xlu0 %1568
    %v1570 = vsel %vm1196, %v1548, 0.0
    %1571 = vadd.xlane.f32.xlu0 %v1570
    %v1572 = vpop.xlane.xlu0 %1571
    %v1573 = vmul.f32 %v787, %v588
    %v1574 = vmul.f32 %v787, %v589
    %v1575 = vmul.f32 %v791, %v596
    %v1576 = vmul.f32 %v791, %v597
    %v1577 = vmul.f32 %v795, %v588
    %v1578 = vmul.f32 %v795, %v589
    %v1579 = vmul.f32 %v799, %v596
    %v1580 = vmul.f32 %v799, %v597
    %v1581 = vmul.f32 %v803, %v588
    %v1582 = vmul.f32 %v803, %v589
    %v1583 = vmul.f32 %v807, %v596
    %v1584 = vmul.f32 %v807, %v597
    %v1585 = vmul.f32 %v811, %v588
    %v1586 = vmul.f32 %v811, %v589
    %v1587 = vmul.f32 %v815, %v596
    %v1588 = vmul.f32 %v815, %v597
    %v1589 = vmul.f32 %v819, %v588
    %v1590 = vmul.f32 %v819, %v589
    %v1591 = vmul.f32 %v823, %v596
    %v1592 = vmul.f32 %v823, %v597
    %v1593 = vmul.f32 %v827, %v588
    %v1594 = vmul.f32 %v827, %v589
    %v1595 = vmul.f32 %v831, %v596
    %v1596 = vmul.f32 %v831, %v597
    %v1597 = vmul.f32 %v835, %v588
    %v1598 = vmul.f32 %v835, %v589
    %v1599 = vmul.f32 %v839, %v596
    %v1600 = vmul.f32 %v839, %v597
    %v1601 = vmul.f32 %v843, %v588
    %v1602 = vmul.f32 %v843, %v589
    %v1603 = vmul.f32 %v847, %v596
    %v1604 = vmul.f32 %v847, %v597
    %v1605 = vsel %vm896, %v1573, 0.0
    %1606 = vadd.xlane.f32.xlu0 %v1605
    %v1607 = vpop.xlane.xlu0 %1606
    %v1608 = vsel %vm896, %v1574, 0.0
    %1609 = vadd.xlane.f32.xlu0 %v1608
    %v1610 = vpop.xlane.xlu0 %1609
    %v1611 = vsel %vm896, %v1575, 0.0
    %1612 = vadd.xlane.f32.xlu0 %v1611
    %v1613 = vpop.xlane.xlu0 %1612
    %v1614 = vsel %vm896, %v1576, 0.0
    %1615 = vadd.xlane.f32.xlu0 %v1614
    %v1616 = vpop.xlane.xlu0 %1615
    %v1617 = vsel %vm896, %v1577, 0.0
    %1618 = vadd.xlane.f32.xlu0 %v1617
    %v1619 = vpop.xlane.xlu0 %1618
    %v1620 = vsel %vm896, %v1578, 0.0
    %1621 = vadd.xlane.f32.xlu0 %v1620
    %v1622 = vpop.xlane.xlu0 %1621
    %v1623 = vsel %vm896, %v1579, 0.0
    %1624 = vadd.xlane.f32.xlu0 %v1623
    %v1625 = vpop.xlane.xlu0 %1624
    %v1626 = vsel %vm896, %v1580, 0.0
    %1627 = vadd.xlane.f32.xlu0 %v1626
    %v1628 = vpop.xlane.xlu0 %1627
    %v1629 = vsel %vm896, %v1581, 0.0
    %1630 = vadd.xlane.f32.xlu0 %v1629
    %v1631 = vpop.xlane.xlu0 %1630
    %v1632 = vsel %vm896, %v1582, 0.0
    %1633 = vadd.xlane.f32.xlu0 %v1632
    %v1634 = vpop.xlane.xlu0 %1633
    %v1635 = vsel %vm896, %v1583, 0.0
    %1636 = vadd.xlane.f32.xlu0 %v1635
    %v1637 = vpop.xlane.xlu0 %1636
    %v1638 = vsel %vm896, %v1584, 0.0
    %1639 = vadd.xlane.f32.xlu0 %v1638
    %v1640 = vpop.xlane.xlu0 %1639
    %v1641 = vsel %vm896, %v1585, 0.0
    %1642 = vadd.xlane.f32.xlu0 %v1641
    %v1643 = vpop.xlane.xlu0 %1642
    %v1644 = vsel %vm896, %v1586, 0.0
    %1645 = vadd.xlane.f32.xlu0 %v1644
    %v1646 = vpop.xlane.xlu0 %1645
    %v1647 = vsel %vm896, %v1587, 0.0
    %1648 = vadd.xlane.f32.xlu0 %v1647
    %v1649 = vpop.xlane.xlu0 %1648
    %v1650 = vsel %vm896, %v1588, 0.0
    %1651 = vadd.xlane.f32.xlu0 %v1650
    %v1652 = vpop.xlane.xlu0 %1651
    %v1653 = vsel %vm896, %v1589, 0.0
    %1654 = vadd.xlane.f32.xlu0 %v1653
    %v1655 = vpop.xlane.xlu0 %1654
    %v1656 = vsel %vm896, %v1590, 0.0
    %1657 = vadd.xlane.f32.xlu0 %v1656
    %v1658 = vpop.xlane.xlu0 %1657
    %v1659 = vsel %vm896, %v1591, 0.0
    %1660 = vadd.xlane.f32.xlu0 %v1659
    %v1661 = vpop.xlane.xlu0 %1660
    %v1662 = vsel %vm896, %v1592, 0.0
    %1663 = vadd.xlane.f32.xlu0 %v1662
    %v1664 = vpop.xlane.xlu0 %1663
    %v1665 = vsel %vm896, %v1593, 0.0
    %1666 = vadd.xlane.f32.xlu0 %v1665
    %v1667 = vpop.xlane.xlu0 %1666
    %v1668 = vsel %vm896, %v1594, 0.0
    %1669 = vadd.xlane.f32.xlu0 %v1668
    %v1670 = vpop.xlane.xlu0 %1669
    %v1671 = vsel %vm896, %v1595, 0.0
    %1672 = vadd.xlane.f32.xlu0 %v1671
    %v1673 = vpop.xlane.xlu0 %1672
    %v1674 = vsel %vm896, %v1596, 0.0
    %1675 = vadd.xlane.f32.xlu0 %v1674
    %v1676 = vpop.xlane.xlu0 %1675
    %v1677 = vsel %vm896, %v1597, 0.0
    %1678 = vadd.xlane.f32.xlu0 %v1677
    %v1679 = vpop.xlane.xlu0 %1678
    %v1680 = vsel %vm896, %v1598, 0.0
    %1681 = vadd.xlane.f32.xlu0 %v1680
    %v1682 = vpop.xlane.xlu0 %1681
    %v1683 = vsel %vm896, %v1599, 0.0
    %1684 = vadd.xlane.f32.xlu0 %v1683
    %v1685 = vpop.xlane.xlu0 %1684
    %v1686 = vsel %vm896, %v1600, 0.0
    %1687 = vadd.xlane.f32.xlu0 %v1686
    %v1688 = vpop.xlane.xlu0 %1687
    %v1689 = vsel %vm896, %v1601, 0.0
    %1690 = vadd.xlane.f32.xlu0 %v1689
    %v1691 = vpop.xlane.xlu0 %1690
    %v1692 = vsel %vm896, %v1602, 0.0
    %1693 = vadd.xlane.f32.xlu0 %v1692
    %v1694 = vpop.xlane.xlu0 %1693
    %v1695 = vsel %vm896, %v1603, 0.0
    %1696 = vadd.xlane.f32.xlu0 %v1695
    %v1697 = vpop.xlane.xlu0 %1696
    %v1698 = vsel %vm896, %v1604, 0.0
    %1699 = vadd.xlane.f32.xlu0 %v1698
    %v1700 = vpop.xlane.xlu0 %1699
    %v1733 = vlaneseq
    %v1734 = vshrl.u32 %v1733, 7
    %v1735 = vsub.s32 %v55, %v1734
    %v1736 = vrot.slane %v1607, %v1735
    %v1737 = vlaneseq
    %v1738 = vshrl.u32 %v1737, 7
    %v1739 = vsub.s32 %v1029, %v1738
    %v1740 = vrot.slane %v1610, %v1739
    %v1741 = vsel %vm1034, %v1740, %v1736
    %v1742 = vlaneseq
    %v1743 = vshrl.u32 %v1742, 7
    %v1744 = vsub.s32 %v55, %v1743
    %v1745 = vrot.slane %v1613, %v1744
    %v1746 = vlaneseq
    %v1747 = vshrl.u32 %v1746, 7
    %v1748 = vsub.s32 %v1029, %v1747
    %v1749 = vrot.slane %v1616, %v1748
    %v1750 = vsel %vm1034, %v1749, %v1745
    %v1751 = vlaneseq
    %v1752 = vshrl.u32 %v1751, 7
    %v1753 = vsub.s32 %v55, %v1752
    %v1754 = vrot.slane %v1619, %v1753
    %v1755 = vlaneseq
    %v1756 = vshrl.u32 %v1755, 7
    %v1757 = vsub.s32 %v1029, %v1756
    %v1758 = vrot.slane %v1622, %v1757
    %v1759 = vsel %vm1034, %v1758, %v1754
    %v1760 = vlaneseq
    %v1761 = vshrl.u32 %v1760, 7
    %v1762 = vsub.s32 %v55, %v1761
    %v1763 = vrot.slane %v1625, %v1762
    %v1764 = vlaneseq
    %v1765 = vshrl.u32 %v1764, 7
    %v1766 = vsub.s32 %v1029, %v1765
    %v1767 = vrot.slane %v1628, %v1766
    %v1768 = vsel %vm1034, %v1767, %v1763
    %v1769 = vlaneseq
    %v1770 = vshrl.u32 %v1769, 7
    %v1771 = vsub.s32 %v55, %v1770
    %v1772 = vrot.slane %v1631, %v1771
    %v1773 = vlaneseq
    %v1774 = vshrl.u32 %v1773, 7
    %v1775 = vsub.s32 %v1029, %v1774
    %v1776 = vrot.slane %v1634, %v1775
    %v1777 = vsel %vm1034, %v1776, %v1772
    %v1778 = vlaneseq
    %v1779 = vshrl.u32 %v1778, 7
    %v1780 = vsub.s32 %v55, %v1779
    %v1781 = vrot.slane %v1637, %v1780
    %v1782 = vlaneseq
    %v1783 = vshrl.u32 %v1782, 7
    %v1784 = vsub.s32 %v1029, %v1783
    %v1785 = vrot.slane %v1640, %v1784
    %v1786 = vsel %vm1034, %v1785, %v1781
    %v1787 = vlaneseq
    %v1788 = vshrl.u32 %v1787, 7
    %v1789 = vsub.s32 %v55, %v1788
    %v1790 = vrot.slane %v1643, %v1789
    %v1791 = vlaneseq
    %v1792 = vshrl.u32 %v1791, 7
    %v1793 = vsub.s32 %v1029, %v1792
    %v1794 = vrot.slane %v1646, %v1793
    %v1795 = vsel %vm1034, %v1794, %v1790
    %v1796 = vlaneseq
    %v1797 = vshrl.u32 %v1796, 7
    %v1798 = vsub.s32 %v55, %v1797
    %v1799 = vrot.slane %v1649, %v1798
    %v1800 = vlaneseq
    %v1801 = vshrl.u32 %v1800, 7
    %v1802 = vsub.s32 %v1029, %v1801
    %v1803 = vrot.slane %v1652, %v1802
    %v1804 = vsel %vm1034, %v1803, %v1799
    %v1805 = vlaneseq
    %v1806 = vshrl.u32 %v1805, 7
    %v1807 = vsub.s32 %v55, %v1806
    %v1808 = vrot.slane %v1655, %v1807
    %v1809 = vlaneseq
    %v1810 = vshrl.u32 %v1809, 7
    %v1811 = vsub.s32 %v1029, %v1810
    %v1812 = vrot.slane %v1658, %v1811
    %v1813 = vsel %vm1034, %v1812, %v1808
    %v1814 = vlaneseq
    %v1815 = vshrl.u32 %v1814, 7
    %v1816 = vsub.s32 %v55, %v1815
    %v1817 = vrot.slane %v1661, %v1816
    %v1818 = vlaneseq
    %v1819 = vshrl.u32 %v1818, 7
    %v1820 = vsub.s32 %v1029, %v1819
    %v1821 = vrot.slane %v1664, %v1820
    %v1822 = vsel %vm1034, %v1821, %v1817
    %v1823 = vlaneseq
    %v1824 = vshrl.u32 %v1823, 7
    %v1825 = vsub.s32 %v55, %v1824
    %v1826 = vrot.slane %v1667, %v1825
    %v1827 = vlaneseq
    %v1828 = vshrl.u32 %v1827, 7
    %v1829 = vsub.s32 %v1029, %v1828
    %v1830 = vrot.slane %v1670, %v1829
    %v1831 = vsel %vm1034, %v1830, %v1826
    %v1832 = vlaneseq
    %v1833 = vshrl.u32 %v1832, 7
    %v1834 = vsub.s32 %v55, %v1833
    %v1835 = vrot.slane %v1673, %v1834
    %v1836 = vlaneseq
    %v1837 = vshrl.u32 %v1836, 7
    %v1838 = vsub.s32 %v1029, %v1837
    %v1839 = vrot.slane %v1676, %v1838
    %v1840 = vsel %vm1034, %v1839, %v1835
    %v1841 = vlaneseq
    %v1842 = vshrl.u32 %v1841, 7
    %v1843 = vsub.s32 %v55, %v1842
    %v1844 = vrot.slane %v1679, %v1843
    %v1845 = vlaneseq
    %v1846 = vshrl.u32 %v1845, 7
    %v1847 = vsub.s32 %v1029, %v1846
    %v1848 = vrot.slane %v1682, %v1847
    %v1849 = vsel %vm1034, %v1848, %v1844
    %v1850 = vlaneseq
    %v1851 = vshrl.u32 %v1850, 7
    %v1852 = vsub.s32 %v55, %v1851
    %v1853 = vrot.slane %v1685, %v1852
    %v1854 = vlaneseq
    %v1855 = vshrl.u32 %v1854, 7
    %v1856 = vsub.s32 %v1029, %v1855
    %v1857 = vrot.slane %v1688, %v1856
    %v1858 = vsel %vm1034, %v1857, %v1853
    %v1859 = vlaneseq
    %v1860 = vshrl.u32 %v1859, 7
    %v1861 = vsub.s32 %v55, %v1860
    %v1862 = vrot.slane %v1691, %v1861
    %v1863 = vlaneseq
    %v1864 = vshrl.u32 %v1863, 7
    %v1865 = vsub.s32 %v1029, %v1864
    %v1866 = vrot.slane %v1694, %v1865
    %v1867 = vsel %vm1034, %v1866, %v1862
    %v1868 = vlaneseq
    %v1869 = vshrl.u32 %v1868, 7
    %v1870 = vsub.s32 %v55, %v1869
    %v1871 = vrot.slane %v1697, %v1870
    %v1872 = vlaneseq
    %v1873 = vshrl.u32 %v1872, 7
    %v1874 = vsub.s32 %v1029, %v1873
    %v1875 = vrot.slane %v1700, %v1874
    %v1876 = vsel %vm1034, %v1875, %v1871
    %v1877 = vsel %vm1171, %v1750, %v1741
    %v1878 = vsel %vm1171, %v1768, %v1759
    %v1879 = vsel %vm1171, %v1786, %v1777
    %v1880 = vsel %vm1171, %v1804, %v1795
    %v1881 = vsel %vm1171, %v1822, %v1813
    %v1882 = vsel %vm1171, %v1840, %v1831
    %v1883 = vsel %vm1171, %v1858, %v1849
    %v1884 = vsel %vm1171, %v1876, %v1867
    %v1893 = vmul.f32 %v576, %v1877
    %v1894 = vmul.f32 %v577, %v1878
    %v1895 = vmul.f32 %v578, %v1879
    %v1896 = vmul.f32 %v579, %v1880
    %v1897 = vmul.f32 %v580, %v1881
    %v1898 = vmul.f32 %v581, %v1882
    %v1899 = vmul.f32 %v582, %v1883
    %v1900 = vmul.f32 %v583, %v1884
    %v1901 = vsel %vm1196, %v1893, 0.0
    %1902 = vadd.xlane.f32.xlu0 %v1901
    %v1903 = vpop.xlane.xlu0 %1902
    %v1904 = vsel %vm1196, %v1894, 0.0
    %1905 = vadd.xlane.f32.xlu0 %v1904
    %v1906 = vpop.xlane.xlu0 %1905
    %v1907 = vsel %vm1196, %v1895, 0.0
    %1908 = vadd.xlane.f32.xlu0 %v1907
    %v1909 = vpop.xlane.xlu0 %1908
    %v1910 = vsel %vm1196, %v1896, 0.0
    %1911 = vadd.xlane.f32.xlu0 %v1910
    %v1912 = vpop.xlane.xlu0 %1911
    %v1913 = vsel %vm1196, %v1897, 0.0
    %1914 = vadd.xlane.f32.xlu0 %v1913
    %v1915 = vpop.xlane.xlu0 %1914
    %v1916 = vsel %vm1196, %v1898, 0.0
    %1917 = vadd.xlane.f32.xlu0 %v1916
    %v1918 = vpop.xlane.xlu0 %1917
    %v1919 = vsel %vm1196, %v1899, 0.0
    %1920 = vadd.xlane.f32.xlu0 %v1919
    %v1921 = vpop.xlane.xlu0 %1920
    %v1922 = vsel %vm1196, %v1900, 0.0
    %1923 = vadd.xlane.f32.xlu0 %v1922
    %v1924 = vpop.xlane.xlu0 %1923
    %v1925 = vmul.f32 %v787, %v590
    %v1926 = vmul.f32 %v787, %v591
    %v1927 = vmul.f32 %v791, %v598
    %v1928 = vmul.f32 %v791, %v599
    %v1929 = vmul.f32 %v795, %v590
    %v1930 = vmul.f32 %v795, %v591
    %v1931 = vmul.f32 %v799, %v598
    %v1932 = vmul.f32 %v799, %v599
    %v1933 = vmul.f32 %v803, %v590
    %v1934 = vmul.f32 %v803, %v591
    %v1935 = vmul.f32 %v807, %v598
    %v1936 = vmul.f32 %v807, %v599
    %v1937 = vmul.f32 %v811, %v590
    %v1938 = vmul.f32 %v811, %v591
    %v1939 = vmul.f32 %v815, %v598
    %v1940 = vmul.f32 %v815, %v599
    %v1941 = vmul.f32 %v819, %v590
    %v1942 = vmul.f32 %v819, %v591
    %v1943 = vmul.f32 %v823, %v598
    %v1944 = vmul.f32 %v823, %v599
    %v1945 = vmul.f32 %v827, %v590
    %v1946 = vmul.f32 %v827, %v591
    %v1947 = vmul.f32 %v831, %v598
    %v1948 = vmul.f32 %v831, %v599
    %v1949 = vmul.f32 %v835, %v590
    %v1950 = vmul.f32 %v835, %v591
    %v1951 = vmul.f32 %v839, %v598
    %v1952 = vmul.f32 %v839, %v599
    %v1953 = vmul.f32 %v843, %v590
    %v1954 = vmul.f32 %v843, %v591
    %v1955 = vmul.f32 %v847, %v598
    %v1956 = vmul.f32 %v847, %v599
    %v1957 = vsel %vm896, %v1925, 0.0
    %1958 = vadd.xlane.f32.xlu0 %v1957
    %v1959 = vpop.xlane.xlu0 %1958
    %v1960 = vsel %vm896, %v1926, 0.0
    %1961 = vadd.xlane.f32.xlu0 %v1960
    %v1962 = vpop.xlane.xlu0 %1961
    %v1963 = vsel %vm896, %v1927, 0.0
    %1964 = vadd.xlane.f32.xlu0 %v1963
    %v1965 = vpop.xlane.xlu0 %1964
    %v1966 = vsel %vm896, %v1928, 0.0
    %1967 = vadd.xlane.f32.xlu0 %v1966
    %v1968 = vpop.xlane.xlu0 %1967
    %v1969 = vsel %vm896, %v1929, 0.0
    %1970 = vadd.xlane.f32.xlu0 %v1969
    %v1971 = vpop.xlane.xlu0 %1970
    %v1972 = vsel %vm896, %v1930, 0.0
    %1973 = vadd.xlane.f32.xlu0 %v1972
    %v1974 = vpop.xlane.xlu0 %1973
    %v1975 = vsel %vm896, %v1931, 0.0
    %1976 = vadd.xlane.f32.xlu0 %v1975
    %v1977 = vpop.xlane.xlu0 %1976
    %v1978 = vsel %vm896, %v1932, 0.0
    %1979 = vadd.xlane.f32.xlu0 %v1978
    %v1980 = vpop.xlane.xlu0 %1979
    %v1981 = vsel %vm896, %v1933, 0.0
    %1982 = vadd.xlane.f32.xlu0 %v1981
    %v1983 = vpop.xlane.xlu0 %1982
    %v1984 = vsel %vm896, %v1934, 0.0
    %1985 = vadd.xlane.f32.xlu0 %v1984
    %v1986 = vpop.xlane.xlu0 %1985
    %v1987 = vsel %vm896, %v1935, 0.0
    %1988 = vadd.xlane.f32.xlu0 %v1987
    %v1989 = vpop.xlane.xlu0 %1988
    %v1990 = vsel %vm896, %v1936, 0.0
    %1991 = vadd.xlane.f32.xlu0 %v1990
    %v1992 = vpop.xlane.xlu0 %1991
    %v1993 = vsel %vm896, %v1937, 0.0
    %1994 = vadd.xlane.f32.xlu0 %v1993
    %v1995 = vpop.xlane.xlu0 %1994
    %v1996 = vsel %vm896, %v1938, 0.0
    %1997 = vadd.xlane.f32.xlu0 %v1996
    %v1998 = vpop.xlane.xlu0 %1997
    %v1999 = vsel %vm896, %v1939, 0.0
    %2000 = vadd.xlane.f32.xlu0 %v1999
    %v2001 = vpop.xlane.xlu0 %2000
    %v2002 = vsel %vm896, %v1940, 0.0
    %2003 = vadd.xlane.f32.xlu0 %v2002
    %v2004 = vpop.xlane.xlu0 %2003
    %v2005 = vsel %vm896, %v1941, 0.0
    %2006 = vadd.xlane.f32.xlu0 %v2005
    %v2007 = vpop.xlane.xlu0 %2006
    %v2008 = vsel %vm896, %v1942, 0.0
    %2009 = vadd.xlane.f32.xlu0 %v2008
    %v2010 = vpop.xlane.xlu0 %2009
    %v2011 = vsel %vm896, %v1943, 0.0
    %2012 = vadd.xlane.f32.xlu0 %v2011
    %v2013 = vpop.xlane.xlu0 %2012
    %v2014 = vsel %vm896, %v1944, 0.0
    %2015 = vadd.xlane.f32.xlu0 %v2014
    %v2016 = vpop.xlane.xlu0 %2015
    %v2017 = vsel %vm896, %v1945, 0.0
    %2018 = vadd.xlane.f32.xlu0 %v2017
    %v2019 = vpop.xlane.xlu0 %2018
    %v2020 = vsel %vm896, %v1946, 0.0
    %2021 = vadd.xlane.f32.xlu0 %v2020
    %v2022 = vpop.xlane.xlu0 %2021
    %v2023 = vsel %vm896, %v1947, 0.0
    %2024 = vadd.xlane.f32.xlu0 %v2023
    %v2025 = vpop.xlane.xlu0 %2024
    %v2026 = vsel %vm896, %v1948, 0.0
    %2027 = vadd.xlane.f32.xlu0 %v2026
    %v2028 = vpop.xlane.xlu0 %2027
    %v2029 = vsel %vm896, %v1949, 0.0
    %2030 = vadd.xlane.f32.xlu0 %v2029
    %v2031 = vpop.xlane.xlu0 %2030
    %v2032 = vsel %vm896, %v1950, 0.0
    %2033 = vadd.xlane.f32.xlu0 %v2032
    %v2034 = vpop.xlane.xlu0 %2033
    %v2035 = vsel %vm896, %v1951, 0.0
    %2036 = vadd.xlane.f32.xlu0 %v2035
    %v2037 = vpop.xlane.xlu0 %2036
    %v2038 = vsel %vm896, %v1952, 0.0
    %2039 = vadd.xlane.f32.xlu0 %v2038
    %v2040 = vpop.xlane.xlu0 %2039
    %v2041 = vsel %vm896, %v1953, 0.0
    %2042 = vadd.xlane.f32.xlu0 %v2041
    %v2043 = vpop.xlane.xlu0 %2042
    %v2044 = vsel %vm896, %v1954, 0.0
    %2045 = vadd.xlane.f32.xlu0 %v2044
    %v2046 = vpop.xlane.xlu0 %2045
    %v2047 = vsel %vm896, %v1955, 0.0
    %2048 = vadd.xlane.f32.xlu0 %v2047
    %v2049 = vpop.xlane.xlu0 %2048
    %v2050 = vsel %vm896, %v1956, 0.0
    %2051 = vadd.xlane.f32.xlu0 %v2050
    %v2052 = vpop.xlane.xlu0 %2051
    %v2085 = vlaneseq
    %v2086 = vshrl.u32 %v2085, 7
    %v2087 = vsub.s32 %v55, %v2086
    %v2088 = vrot.slane %v1959, %v2087
    %v2089 = vlaneseq
    %v2090 = vshrl.u32 %v2089, 7
    %v2091 = vsub.s32 %v1029, %v2090
    %v2092 = vrot.slane %v1962, %v2091
    %v2093 = vsel %vm1034, %v2092, %v2088
    %v2094 = vlaneseq
    %v2095 = vshrl.u32 %v2094, 7
    %v2096 = vsub.s32 %v55, %v2095
    %v2097 = vrot.slane %v1965, %v2096
    %v2098 = vlaneseq
    %v2099 = vshrl.u32 %v2098, 7
    %v2100 = vsub.s32 %v1029, %v2099
    %v2101 = vrot.slane %v1968, %v2100
    %v2102 = vsel %vm1034, %v2101, %v2097
    %v2103 = vlaneseq
    %v2104 = vshrl.u32 %v2103, 7
    %v2105 = vsub.s32 %v55, %v2104
    %v2106 = vrot.slane %v1971, %v2105
    %v2107 = vlaneseq
    %v2108 = vshrl.u32 %v2107, 7
    %v2109 = vsub.s32 %v1029, %v2108
    %v2110 = vrot.slane %v1974, %v2109
    %v2111 = vsel %vm1034, %v2110, %v2106
    %v2112 = vlaneseq
    %v2113 = vshrl.u32 %v2112, 7
    %v2114 = vsub.s32 %v55, %v2113
    %v2115 = vrot.slane %v1977, %v2114
    %v2116 = vlaneseq
    %v2117 = vshrl.u32 %v2116, 7
    %v2118 = vsub.s32 %v1029, %v2117
    %v2119 = vrot.slane %v1980, %v2118
    %v2120 = vsel %vm1034, %v2119, %v2115
    %v2121 = vlaneseq
    %v2122 = vshrl.u32 %v2121, 7
    %v2123 = vsub.s32 %v55, %v2122
    %v2124 = vrot.slane %v1983, %v2123
    %v2125 = vlaneseq
    %v2126 = vshrl.u32 %v2125, 7
    %v2127 = vsub.s32 %v1029, %v2126
    %v2128 = vrot.slane %v1986, %v2127
    %v2129 = vsel %vm1034, %v2128, %v2124
    %v2130 = vlaneseq
    %v2131 = vshrl.u32 %v2130, 7
    %v2132 = vsub.s32 %v55, %v2131
    %v2133 = vrot.slane %v1989, %v2132
    %v2134 = vlaneseq
    %v2135 = vshrl.u32 %v2134, 7
    %v2136 = vsub.s32 %v1029, %v2135
    %v2137 = vrot.slane %v1992, %v2136
    %v2138 = vsel %vm1034, %v2137, %v2133
    %v2139 = vlaneseq
    %v2140 = vshrl.u32 %v2139, 7
    %v2141 = vsub.s32 %v55, %v2140
    %v2142 = vrot.slane %v1995, %v2141
    %v2143 = vlaneseq
    %v2144 = vshrl.u32 %v2143, 7
    %v2145 = vsub.s32 %v1029, %v2144
    %v2146 = vrot.slane %v1998, %v2145
    %v2147 = vsel %vm1034, %v2146, %v2142
    %v2148 = vlaneseq
    %v2149 = vshrl.u32 %v2148, 7
    %v2150 = vsub.s32 %v55, %v2149
    %v2151 = vrot.slane %v2001, %v2150
    %v2152 = vlaneseq
    %v2153 = vshrl.u32 %v2152, 7
    %v2154 = vsub.s32 %v1029, %v2153
    %v2155 = vrot.slane %v2004, %v2154
    %v2156 = vsel %vm1034, %v2155, %v2151
    %v2157 = vlaneseq
    %v2158 = vshrl.u32 %v2157, 7
    %v2159 = vsub.s32 %v55, %v2158
    %v2160 = vrot.slane %v2007, %v2159
    %v2161 = vlaneseq
    %v2162 = vshrl.u32 %v2161, 7
    %v2163 = vsub.s32 %v1029, %v2162
    %v2164 = vrot.slane %v2010, %v2163
    %v2165 = vsel %vm1034, %v2164, %v2160
    %v2166 = vlaneseq
    %v2167 = vshrl.u32 %v2166, 7
    %v2168 = vsub.s32 %v55, %v2167
    %v2169 = vrot.slane %v2013, %v2168
    %v2170 = vlaneseq
    %v2171 = vshrl.u32 %v2170, 7
    %v2172 = vsub.s32 %v1029, %v2171
    %v2173 = vrot.slane %v2016, %v2172
    %v2174 = vsel %vm1034, %v2173, %v2169
    %v2175 = vlaneseq
    %v2176 = vshrl.u32 %v2175, 7
    %v2177 = vsub.s32 %v55, %v2176
    %v2178 = vrot.slane %v2019, %v2177
    %v2179 = vlaneseq
    %v2180 = vshrl.u32 %v2179, 7
    %v2181 = vsub.s32 %v1029, %v2180
    %v2182 = vrot.slane %v2022, %v2181
    %v2183 = vsel %vm1034, %v2182, %v2178
    %v2184 = vlaneseq
    %v2185 = vshrl.u32 %v2184, 7
    %v2186 = vsub.s32 %v55, %v2185
    %v2187 = vrot.slane %v2025, %v2186
    %v2188 = vlaneseq
    %v2189 = vshrl.u32 %v2188, 7
    %v2190 = vsub.s32 %v1029, %v2189
    %v2191 = vrot.slane %v2028, %v2190
    %v2192 = vsel %vm1034, %v2191, %v2187
    %v2193 = vlaneseq
    %v2194 = vshrl.u32 %v2193, 7
    %v2195 = vsub.s32 %v55, %v2194
    %v2196 = vrot.slane %v2031, %v2195
    %v2197 = vlaneseq
    %v2198 = vshrl.u32 %v2197, 7
    %v2199 = vsub.s32 %v1029, %v2198
    %v2200 = vrot.slane %v2034, %v2199
    %v2201 = vsel %vm1034, %v2200, %v2196
    %v2202 = vlaneseq
    %v2203 = vshrl.u32 %v2202, 7
    %v2204 = vsub.s32 %v55, %v2203
    %v2205 = vrot.slane %v2037, %v2204
    %v2206 = vlaneseq
    %v2207 = vshrl.u32 %v2206, 7
    %v2208 = vsub.s32 %v1029, %v2207
    %v2209 = vrot.slane %v2040, %v2208
    %v2210 = vsel %vm1034, %v2209, %v2205
    %v2211 = vlaneseq
    %v2212 = vshrl.u32 %v2211, 7
    %v2213 = vsub.s32 %v55, %v2212
    %v2214 = vrot.slane %v2043, %v2213
    %v2215 = vlaneseq
    %v2216 = vshrl.u32 %v2215, 7
    %v2217 = vsub.s32 %v1029, %v2216
    %v2218 = vrot.slane %v2046, %v2217
    %v2219 = vsel %vm1034, %v2218, %v2214
    %v2220 = vlaneseq
    %v2221 = vshrl.u32 %v2220, 7
    %v2222 = vsub.s32 %v55, %v2221
    %v2223 = vrot.slane %v2049, %v2222
    %v2224 = vlaneseq
    %v2225 = vshrl.u32 %v2224, 7
    %v2226 = vsub.s32 %v1029, %v2225
    %v2227 = vrot.slane %v2052, %v2226
    %v2228 = vsel %vm1034, %v2227, %v2223
    %v2229 = vsel %vm1171, %v2102, %v2093
    %v2230 = vsel %vm1171, %v2120, %v2111
    %v2231 = vsel %vm1171, %v2138, %v2129
    %v2232 = vsel %vm1171, %v2156, %v2147
    %v2233 = vsel %vm1171, %v2174, %v2165
    %v2234 = vsel %vm1171, %v2192, %v2183
    %v2235 = vsel %vm1171, %v2210, %v2201
    %v2236 = vsel %vm1171, %v2228, %v2219
    %v2245 = vmul.f32 %v576, %v2229
    %v2246 = vmul.f32 %v577, %v2230
    %v2247 = vmul.f32 %v578, %v2231
    %v2248 = vmul.f32 %v579, %v2232
    %v2249 = vmul.f32 %v580, %v2233
    %v2250 = vmul.f32 %v581, %v2234
    %v2251 = vmul.f32 %v582, %v2235
    %v2252 = vmul.f32 %v583, %v2236
    %v2253 = vsel %vm1196, %v2245, 0.0
    %2254 = vadd.xlane.f32.xlu0 %v2253
    %v2255 = vpop.xlane.xlu0 %2254
    %v2256 = vsel %vm1196, %v2246, 0.0
    %2257 = vadd.xlane.f32.xlu0 %v2256
    %v2258 = vpop.xlane.xlu0 %2257
    %v2259 = vsel %vm1196, %v2247, 0.0
    %2260 = vadd.xlane.f32.xlu0 %v2259
    %v2261 = vpop.xlane.xlu0 %2260
    %v2262 = vsel %vm1196, %v2248, 0.0
    %2263 = vadd.xlane.f32.xlu0 %v2262
    %v2264 = vpop.xlane.xlu0 %2263
    %v2265 = vsel %vm1196, %v2249, 0.0
    %2266 = vadd.xlane.f32.xlu0 %v2265
    %v2267 = vpop.xlane.xlu0 %2266
    %v2268 = vsel %vm1196, %v2250, 0.0
    %2269 = vadd.xlane.f32.xlu0 %v2268
    %v2270 = vpop.xlane.xlu0 %2269
    %v2271 = vsel %vm1196, %v2251, 0.0
    %2272 = vadd.xlane.f32.xlu0 %v2271
    %v2273 = vpop.xlane.xlu0 %2272
    %v2274 = vsel %vm1196, %v2252, 0.0
    %2275 = vadd.xlane.f32.xlu0 %v2274
    %v2276 = vpop.xlane.xlu0 %2275
    %vm2277 = vcmask 7168
    %v2278 = vsel %vm2277, %v1199, %v1551
    %v2279 = vsel %vm2277, %v1202, %v1554
    %v2280 = vsel %vm2277, %v1205, %v1557
    %v2281 = vsel %vm2277, %v1208, %v1560
    %v2282 = vsel %vm2277, %v1211, %v1563
    %v2283 = vsel %vm2277, %v1214, %v1566
    %v2284 = vsel %vm2277, %v1217, %v1569
    %v2285 = vsel %vm2277, %v1220, %v1572
    %vm2286 = vcmask 15360
    %v2287 = vsel %vm2286, %v2278, %v1903
    %v2288 = vsel %vm2286, %v2279, %v1906
    %v2289 = vsel %vm2286, %v2280, %v1909
    %v2290 = vsel %vm2286, %v2281, %v1912
    %v2291 = vsel %vm2286, %v2282, %v1915
    %v2292 = vsel %vm2286, %v2283, %v1918
    %v2293 = vsel %vm2286, %v2284, %v1921
    %v2294 = vsel %vm2286, %v2285, %v1924
    %vm2295 = vcmask 23552
    %v2296 = vsel %vm2295, %v2287, %v2255
    %v2297 = vsel %vm2295, %v2288, %v2258
    %v2298 = vsel %vm2295, %v2289, %v2261
    %v2299 = vsel %vm2295, %v2290, %v2264
    %v2300 = vsel %vm2295, %v2291, %v2267
    %v2301 = vsel %vm2295, %v2292, %v2270
    %v2302 = vsel %vm2295, %v2293, %v2273
    %v2303 = vsel %vm2295, %v2294, %v2276
    %vm2304 = vcmask 25600
    %2305 = vst.msk [vmem:[%s2] sm:$0x3] %vm2304, %v2296
    %2306 = vst.msk [vmem:[%s2 + $0x2] sm:$0x3] %vm2304, %v2297
    %2307 = vst.msk [vmem:[%s2 + $0x4] sm:$0x3] %vm2304, %v2298
    %2308 = vst.msk [vmem:[%s2 + $0x6] sm:$0x3] %vm2304, %v2299
    %2309 = vst.msk [vmem:[%s2 + $0x8] sm:$0x3] %vm2304, %v2300
    %2310 = vst.msk [vmem:[%s2 + $0xa] sm:$0x3] %vm2304, %v2301
    %2311 = vst.msk [vmem:[%s2 + $0xc] sm:$0x3] %vm2304, %v2302
    %2312 = vst.msk [vmem:[%s2 + $0xe] sm:$0x3] %vm2304, %v2303
    // Predicated region
    $region14: #{image_feature_extractor_forward.1} parent=1 // pred_check
      _
    $region15: #{image_feature_extractor_forward.1} parent=1 // pred_check_branch
      %2314 = sbr.rel (0) target = $region17
    $region16: #{image_feature_extractor_forward.1} parent=1 // pred_region
      _
    $region17: #{image_feature_extractor_forward.1} parent=1 // pred_fallthru
      _
    // Predicated region
    $region18: #{image_feature_extractor_forward.1} parent=1 // pred_check
      _
    $region19: #{image_feature_extractor_forward.1} parent=1 // pred_check_branch
      %2316 = sbr.rel (0) target = $region21
    $region20: #{image_feature_extractor_forward.1} parent=1 // pred_region
      _
    $region21: #{image_feature_extractor_forward.1} parent=1 // pred_fallthru
      _
    %2317 = vsyncpa [#allocation3], 1

</llo_original>
